<compile_context>
chip_gen: v7x
topology: tpu7x:2x2x1
jax: 0.10.0
libtpu: 0.0.40
codegen_flags: <defaults>
</compile_context>

<pallas_src>
import math

import jax
import jax.numpy as jnp
from jax.experimental import pallas as pl
from jax.experimental.pallas import tpu as pltpu


def _permscore_kernel(x_ref, w_ref, b_ref, o_ref):
    # x_ref: (tm, Kp) VMEM   w_ref: (Kp, P) VMEM   b_ref: (1,) SMEM   o_ref: (tm, P) VMEM
    acc = jnp.dot(x_ref[...], w_ref[...], preferred_element_type=jnp.float32)
    o_ref[...] = (acc + b_ref[0]).astype(o_ref.dtype)


def _choose_packing(K: int, itemsize: int) -> int:
    """Rows packed per packed row (= output lane width). Capped by a 2 MiB weight budget."""
    budget = 2 * 1024 * 1024  # block-diagonal weight is P*P*K*itemsize bytes
    P = 128                   # lane-dense output when affordable
    while P > 1 and P * P * K * itemsize > budget:
        P //= 2
    return P


def permscore_forward(x, weight, bias):
    """x: [..., K]; weight: [1, K] (PyTorch nn.Linear layout); bias: [1] -> out: [..., 1]."""
    orig_shape = x.shape
    K = orig_shape[-1]
    M = math.prod(orig_shape[:-1]) if len(orig_shape) > 1 else 1
    dtype = x.dtype
    itemsize = jnp.dtype(dtype).itemsize

    x2d = x.reshape(M, K)
    w = weight.reshape(K).astype(dtype)

    P = _choose_packing(K, itemsize)
    Kp = P * K
    mp = -(-M // P)                     # packed rows (ceil)
    m_pad = mp * P
    if m_pad != M:                      # pad only so the packing reshape is exact
        x2d = jnp.pad(x2d, ((0, m_pad - M), (0, 0)))
    xp = x2d.reshape(mp, Kp)            # contiguous reshape: metadata only

    # Block-diagonal weight: column p holds w on rows [p*K, (p+1)*K).
    if P > 1:
        w_bd = jnp.kron(jnp.eye(P, dtype=dtype), w.reshape(K, 1))
    else:
        w_bd = w.reshape(K, 1)
    b_smem = bias.reshape(1).astype(jnp.float32)

    # Row-tile size: ~2 MiB of x per tile, multiple of 8 sublanes, clamped to mp.
    tile_budget = 2 * 1024 * 1024
    tm = max(8, (tile_budget // (Kp * itemsize)) // 8 * 8)
    tm = min(tm, 512)
    tm = min(tm, mp)                    # if mp < tm the block equals the full dim -> legal
    grid = (pl.cdiv(mp, tm),)           # ragged last tile handled by Pallas clamping

    cost = pl.CostEstimate(
        flops=2 * M * K,
        transcendentals=0,
        bytes_accessed=itemsize * (m_pad * K + Kp * P + m_pad),
    )

    out = pl.pallas_call(
        _permscore_kernel,
        out_shape=jax.ShapeDtypeStruct((mp, P), dtype),
        grid_spec=pltpu.PrefetchScalarGridSpec(
            num_scalar_prefetch=0,
            grid=grid,
            in_specs=[
                pl.BlockSpec((tm, Kp), lambda i: (i, 0)),           # pipelined x tiles
                pl.BlockSpec((Kp, P), lambda i: (0, 0)),            # resident block-diag weight
                pl.BlockSpec(memory_space=pltpu.MemorySpace.SMEM),  # scalar bias
            ],
            out_specs=pl.BlockSpec((tm, P), lambda i: (i, 0)),
        ),
        compiler_params=pltpu.CompilerParams(
            dimension_semantics=("parallel",),
        ),
        cost_estimate=cost,
    )(xp, w_bd, b_smem)

    out_flat = out.reshape(m_pad)[:M]   # row-major unpack restores original row order
    return out_flat.reshape(*orig_shape[:-1], 1)


if __name__ == "__main__":
    # Module hyperparameters (hidden_size / output_dim are unused in forward)
    input_size = 32
    hidden_size = 16
    output_dim = 4

    key = jax.random.PRNGKey(0)
    kx, kw, kb = jax.random.split(key, 3)

    # Deterministic parameters matching nn.Linear(input_size, 1) shapes
    weight = jax.random.normal(kw, (1, input_size), dtype=jnp.float32) * 0.1
    bias = jax.random.normal(kb, (1,), dtype=jnp.float32) * 0.1

    # Example input: batch=2, seq=8, features=input_size
    x = jax.random.normal(kx, (2, 8, input_size), dtype=jnp.float32)

    fwd = jax.jit(permscore_forward)
    out = jax.block_until_ready(fwd(x, weight, bias))

    # Reference check in plain JAX
    ref = x @ weight.T + bias
    assert out.shape == (2, 8, 1), out.shape
    assert jnp.allclose(out, ref, atol=1e-5, rtol=1e-5), "mismatch vs reference"

    print("KERNEL_OK")
</pallas_src>

<mosaic_0001>
module attributes {stable_mosaic.version = 11 : i64} {
  func.func @_permscore_kernel(%arg0: i32, %arg1: memref<1x4096xf32, #tpu.memory_space<vmem>>, %arg2: memref<4096x128xf32, #tpu.memory_space<vmem>>, %arg3: memref<1xf32, #tpu.memory_space<smem>>, %arg4: memref<1x128xf32, #tpu.memory_space<vmem>>) attributes {dimension_semantics = [#tpu.dimension_semantics<parallel>], iteration_bounds = array<i64: 1>, scalar_prefetch = 0 : i64, scratch_operands = 0 : i64, tpu.core_type = #tpu.core_type<tc>, window_params = [{transform_indices = @transform_0, window_bounds = array<i64: 1, 4096>}, {pipeline_mode = #tpu.pipeline_mode<synchronous>, transform_indices = @transform_1, window_bounds = array<i64: 4096, 128>}, {transform_indices = @transform_2, window_bounds = array<i64: 1>}, {transform_indices = @transform_3, window_bounds = array<i64: 1, 128>}]} {
    %c0 = arith.constant 0 : index
    %c0_0 = arith.constant 0 : index
    %0 = vector.load %arg1[%c0, %c0_0] : memref<1x4096xf32, #tpu.memory_space<vmem>>, vector<1x4096xf32>
    %c0_1 = arith.constant 0 : index
    %c0_2 = arith.constant 0 : index
    %1 = vector.load %arg2[%c0_1, %c0_2] : memref<4096x128xf32, #tpu.memory_space<vmem>>, vector<4096x128xf32>
    %cst = arith.constant dense<0.000000e+00> : vector<1x128xf32>
    %2 = tpu.matmul %0, %1, %cst {dimension_numbers = #tpu.dot_dimension_numbers<[1], [0], [0], [1], [0, 0, 1, 1], [], []>} : vector<1x4096xf32>, vector<4096x128xf32>, vector<1x128xf32> -> vector<1x128xf32>
    %c0_3 = arith.constant 0 : index
    %3 = memref.load %arg3[%c0_3] : memref<1xf32, #tpu.memory_space<smem>>
    %4 = vector.broadcast %3 : f32 to vector<1x128xf32>
    %5 = arith.addf %2, %4 : vector<1x128xf32>
    %c0_4 = arith.constant 0 : index
    %c0_5 = arith.constant 0 : index
    %6 = vector.load %arg4[%c0_4, %c0_5] : memref<1x128xf32, #tpu.memory_space<vmem>>, vector<1x128xf32>
    tpu.vector_store %arg4[%c0_4, %c0_5], %5 {strides = array<i32>} : memref<1x128xf32, #tpu.memory_space<vmem>>, vector<1x128xf32>,
    return
  }
  func.func @transform_0(%arg0: i32) -> (i32, i32) {
    %c0_i32 = arith.constant 0 : i32
    %c0_i32_0 = arith.constant 0 : i32
    return %arg0, %c0_i32 : i32, i32
  }
  func.func @transform_1(%arg0: i32) -> (i32, i32) {
    %c0_i32 = arith.constant 0 : i32
    %c0_i32_0 = arith.constant 0 : i32
    %c0_i32_1 = arith.constant 0 : i32
    return %c0_i32, %c0_i32_0 : i32, i32
  }
  func.func @transform_2(%arg0: i32) -> i32 {
    %c0_i32 = arith.constant 0 : i32
    %c0_i32_0 = arith.constant 0 : i32
    return %c0_i32 : i32
  }
  func.func @transform_3(%arg0: i32) -> (i32, i32) {
    %c0_i32 = arith.constant 0 : i32
    %c0_i32_0 = arith.constant 0 : i32
    return %arg0, %c0_i32 : i32, i32
  }
}

</mosaic_0001>

<llo_original>
// kernel: permscore_forward.1
$region0: #{permscore_forward.1}
  #allocation0 [shape = 'u32[]', space=smem, size = 0x4, offset = 0x4, fixed_abs, tag = 'smem constant byte address 0x4 - core index']
  #allocation1 [shape = 'u32[144,128]{1,0:T(1,128)}', space=vmem, size = 0x12000, scoped, tag = 'internal scratch']
  #allocation2 [shape = 'f32[1]{0:T(128)S(6)}', space=smem, size = 0x200, scoped, tag = 'scoped memory for permscore_forward.1']
  %s0 = inlined_call_operand.vmem [shape: f32[1,4096], index: 0, kind: input, shape index: {}]
  %s1 = inlined_call_operand.vmem [shape: f32[4096,128], index: 1, kind: input, shape index: {}]
  %s2 = inlined_call_operand.<no memory space> [shape: f32[1], index: 2, kind: input, shape index: {}]
  %s3 = inlined_call_operand.vmem [shape: f32[1,128], index: 3, kind: output, shape index: {}]
  %s4 = sld [smem:[#allocation0]]
  $region22: #{permscore_forward.1} parent=0
    _
  %s6 = ssub.s32 1, %s4
  %s7 = scalar_select 0, %s6, %s4
  %8 = sst [smem:[#allocation2]] %s2
  // Predicated region
  $region2: #{permscore_forward.1} parent=0 // pred_check
    _
  $region3: #{permscore_forward.1} parent=0 // pred_check_branch
    %10 = sbr.rel (0) target = $region5
  $region4: #{permscore_forward.1} parent=0 // pred_region
    _
  $region5: #{permscore_forward.1} parent=0 // pred_fallthru
    _
  // Predicated region
  $region6: #{permscore_forward.1} parent=0 // pred_check
    _
  $region7: #{permscore_forward.1} parent=0 // pred_check_branch
    %12 = sbr.rel (0) target = $region9
  $region8: #{permscore_forward.1} parent=0 // pred_region
    _
  $region9: #{permscore_forward.1} parent=0 // pred_fallthru
    _
  // Predicated region
  $region10: #{permscore_forward.1} parent=0 // pred_check
    _
  $region11: #{permscore_forward.1} parent=0 // pred_check_branch
    %14 = sbr.rel (0) target = $region13
  $region12: #{permscore_forward.1} parent=0 // pred_region
    _
  $region13: #{permscore_forward.1} parent=0 // pred_fallthru
    _
  %v15 = vld [vmem:[%s0] sm:$0xff]
  %v16 = vld [vmem:[%s0 + $0x8] sm:$0xff]
  %v17 = vld [vmem:[%s0 + $0x10] sm:$0xff]
  %v18 = vld [vmem:[%s0 + $0x18] sm:$0xff]
  %v19 = vld [vmem:[%s1] sm:$0xff]
  %v20 = vld [vmem:[%s1 + $0x8] sm:$0xff]
  %v21 = vld [vmem:[%s1 + $0x10] sm:$0xff]
  %v22 = vld [vmem:[%s1 + $0x18] sm:$0xff]
  %v23 = vld [vmem:[%s1 + $0x20] sm:$0xff]
  %v24 = vld [vmem:[%s1 + $0x28] sm:$0xff]
  %v25 = vld [vmem:[%s1 + $0x30] sm:$0xff]
  %v26 = vld [vmem:[%s1 + $0x38] sm:$0xff]
  %v27 = vld [vmem:[%s1 + $0x40] sm:$0xff]
  %v28 = vld [vmem:[%s1 + $0x48] sm:$0xff]
  %v29 = vld [vmem:[%s1 + $0x50] sm:$0xff]
  %v30 = vld [vmem:[%s1 + $0x58] sm:$0xff]
  %v31 = vld [vmem:[%s1 + $0x60] sm:$0xff]
  %v32 = vld [vmem:[%s1 + $0x68] sm:$0xff]
  %v33 = vld [vmem:[%s1 + $0x70] sm:$0xff]
  %v34 = vld [vmem:[%s1 + $0x78] sm:$0xff]
  %v35 = vld [vmem:[%s1 + $0x80] sm:$0xff]
  %v36 = vld [vmem:[%s1 + $0x88] sm:$0xff]
  %v37 = vld [vmem:[%s1 + $0x90] sm:$0xff]
  %v38 = vld [vmem:[%s1 + $0x98] sm:$0xff]
  %v39 = vld [vmem:[%s1 + $0xa0] sm:$0xff]
  %v40 = vld [vmem:[%s1 + $0xa8] sm:$0xff]
  %v41 = vld [vmem:[%s1 + $0xb0] sm:$0xff]
  %v42 = vld [vmem:[%s1 + $0xb8] sm:$0xff]
  %v43 = vld [vmem:[%s1 + $0xc0] sm:$0xff]
  %v44 = vld [vmem:[%s1 + $0xc8] sm:$0xff]
  %v45 = vld [vmem:[%s1 + $0xd0] sm:$0xff]
  %v46 = vld [vmem:[%s1 + $0xd8] sm:$0xff]
  %v47 = vld [vmem:[%s1 + $0xe0] sm:$0xff]
  %v48 = vld [vmem:[%s1 + $0xe8] sm:$0xff]
  %v49 = vld [vmem:[%s1 + $0xf0] sm:$0xff]
  %v50 = vld [vmem:[%s1 + $0xf8] sm:$0xff]
  %v51 = vld [vmem:[%s1 + $0x100] sm:$0xff]
  %v52 = vld [vmem:[%s1 + $0x108] sm:$0xff]
  %v53 = vld [vmem:[%s1 + $0x110] sm:$0xff]
  %v54 = vld [vmem:[%s1 + $0x118] sm:$0xff]
  %v55 = vld [vmem:[%s1 + $0x120] sm:$0xff]
  %v56 = vld [vmem:[%s1 + $0x128] sm:$0xff]
  %v57 = vld [vmem:[%s1 + $0x130] sm:$0xff]
  %v58 = vld [vmem:[%s1 + $0x138] sm:$0xff]
  %v59 = vld [vmem:[%s1 + $0x140] sm:$0xff]
  %v60 = vld [vmem:[%s1 + $0x148] sm:$0xff]
  %v61 = vld [vmem:[%s1 + $0x150] sm:$0xff]
  %v62 = vld [vmem:[%s1 + $0x158] sm:$0xff]
  %v63 = vld [vmem:[%s1 + $0x160] sm:$0xff]
  %v64 = vld [vmem:[%s1 + $0x168] sm:$0xff]
  %v65 = vld [vmem:[%s1 + $0x170] sm:$0xff]
  %v66 = vld [vmem:[%s1 + $0x178] sm:$0xff]
  %v67 = vld [vmem:[%s1 + $0x180] sm:$0xff]
  %v68 = vld [vmem:[%s1 + $0x188] sm:$0xff]
  %v69 = vld [vmem:[%s1 + $0x190] sm:$0xff]
  %v70 = vld [vmem:[%s1 + $0x198] sm:$0xff]
  %v71 = vld [vmem:[%s1 + $0x1a0] sm:$0xff]
  %v72 = vld [vmem:[%s1 + $0x1a8] sm:$0xff]
  %v73 = vld [vmem:[%s1 + $0x1b0] sm:$0xff]
  %v74 = vld [vmem:[%s1 + $0x1b8] sm:$0xff]
  %v75 = vld [vmem:[%s1 + $0x1c0] sm:$0xff]
  %v76 = vld [vmem:[%s1 + $0x1c8] sm:$0xff]
  %v77 = vld [vmem:[%s1 + $0x1d0] sm:$0xff]
  %v78 = vld [vmem:[%s1 + $0x1d8] sm:$0xff]
  %v79 = vld [vmem:[%s1 + $0x1e0] sm:$0xff]
  %v80 = vld [vmem:[%s1 + $0x1e8] sm:$0xff]
  %v81 = vld [vmem:[%s1 + $0x1f0] sm:$0xff]
  %v82 = vld [vmem:[%s1 + $0x1f8] sm:$0xff]
  %v83 = vld [vmem:[%s1 + $0x200] sm:$0xff]
  %v84 = vld [vmem:[%s1 + $0x208] sm:$0xff]
  %v85 = vld [vmem:[%s1 + $0x210] sm:$0xff]
  %v86 = vld [vmem:[%s1 + $0x218] sm:$0xff]
  %v87 = vld [vmem:[%s1 + $0x220] sm:$0xff]
  %v88 = vld [vmem:[%s1 + $0x228] sm:$0xff]
  %v89 = vld [vmem:[%s1 + $0x230] sm:$0xff]
  %v90 = vld [vmem:[%s1 + $0x238] sm:$0xff]
  %v91 = vld [vmem:[%s1 + $0x240] sm:$0xff]
  %v92 = vld [vmem:[%s1 + $0x248] sm:$0xff]
  %v93 = vld [vmem:[%s1 + $0x250] sm:$0xff]
  %v94 = vld [vmem:[%s1 + $0x258] sm:$0xff]
  %v95 = vld [vmem:[%s1 + $0x260] sm:$0xff]
  %v96 = vld [vmem:[%s1 + $0x268] sm:$0xff]
  %v97 = vld [vmem:[%s1 + $0x270] sm:$0xff]
  %v98 = vld [vmem:[%s1 + $0x278] sm:$0xff]
  %v99 = vld [vmem:[%s1 + $0x280] sm:$0xff]
  %v100 = vld [vmem:[%s1 + $0x288] sm:$0xff]
  %v101 = vld [vmem:[%s1 + $0x290] sm:$0xff]
  %v102 = vld [vmem:[%s1 + $0x298] sm:$0xff]
  %v103 = vld [vmem:[%s1 + $0x2a0] sm:$0xff]
  %v104 = vld [vmem:[%s1 + $0x2a8] sm:$0xff]
  %v105 = vld [vmem:[%s1 + $0x2b0] sm:$0xff]
  %v106 = vld [vmem:[%s1 + $0x2b8] sm:$0xff]
  %v107 = vld [vmem:[%s1 + $0x2c0] sm:$0xff]
  %v108 = vld [vmem:[%s1 + $0x2c8] sm:$0xff]
  %v109 = vld [vmem:[%s1 + $0x2d0] sm:$0xff]
  %v110 = vld [vmem:[%s1 + $0x2d8] sm:$0xff]
  %v111 = vld [vmem:[%s1 + $0x2e0] sm:$0xff]
  %v112 = vld [vmem:[%s1 + $0x2e8] sm:$0xff]
  %v113 = vld [vmem:[%s1 + $0x2f0] sm:$0xff]
  %v114 = vld [vmem:[%s1 + $0x2f8] sm:$0xff]
  %v115 = vld [vmem:[%s1 + $0x300] sm:$0xff]
  %v116 = vld [vmem:[%s1 + $0x308] sm:$0xff]
  %v117 = vld [vmem:[%s1 + $0x310] sm:$0xff]
  %v118 = vld [vmem:[%s1 + $0x318] sm:$0xff]
  %v119 = vld [vmem:[%s1 + $0x320] sm:$0xff]
  %v120 = vld [vmem:[%s1 + $0x328] sm:$0xff]
  %v121 = vld [vmem:[%s1 + $0x330] sm:$0xff]
  %v122 = vld [vmem:[%s1 + $0x338] sm:$0xff]
  %v123 = vld [vmem:[%s1 + $0x340] sm:$0xff]
  %v124 = vld [vmem:[%s1 + $0x348] sm:$0xff]
  %v125 = vld [vmem:[%s1 + $0x350] sm:$0xff]
  %v126 = vld [vmem:[%s1 + $0x358] sm:$0xff]
  %v127 = vld [vmem:[%s1 + $0x360] sm:$0xff]
  %v128 = vld [vmem:[%s1 + $0x368] sm:$0xff]
  %v129 = vld [vmem:[%s1 + $0x370] sm:$0xff]
  %v130 = vld [vmem:[%s1 + $0x378] sm:$0xff]
  %v131 = vld [vmem:[%s1 + $0x380] sm:$0xff]
  %v132 = vld [vmem:[%s1 + $0x388] sm:$0xff]
  %v133 = vld [vmem:[%s1 + $0x390] sm:$0xff]
  %v134 = vld [vmem:[%s1 + $0x398] sm:$0xff]
  %v135 = vld [vmem:[%s1 + $0x3a0] sm:$0xff]
  %v136 = vld [vmem:[%s1 + $0x3a8] sm:$0xff]
  %v137 = vld [vmem:[%s1 + $0x3b0] sm:$0xff]
  %v138 = vld [vmem:[%s1 + $0x3b8] sm:$0xff]
  %v139 = vld [vmem:[%s1 + $0x3c0] sm:$0xff]
  %v140 = vld [vmem:[%s1 + $0x3c8] sm:$0xff]
  %v141 = vld [vmem:[%s1 + $0x3d0] sm:$0xff]
  %v142 = vld [vmem:[%s1 + $0x3d8] sm:$0xff]
  %v143 = vld [vmem:[%s1 + $0x3e0] sm:$0xff]
  %v144 = vld [vmem:[%s1 + $0x3e8] sm:$0xff]
  %v145 = vld [vmem:[%s1 + $0x3f0] sm:$0xff]
  %v146 = vld [vmem:[%s1 + $0x3f8] sm:$0xff]
  %v147 = vld [vmem:[%s1 + $0x400] sm:$0xff]
  %v148 = vld [vmem:[%s1 + $0x408] sm:$0xff]
  %v149 = vld [vmem:[%s1 + $0x410] sm:$0xff]
  %v150 = vld [vmem:[%s1 + $0x418] sm:$0xff]
  %v151 = vld [vmem:[%s1 + $0x420] sm:$0xff]
  %v152 = vld [vmem:[%s1 + $0x428] sm:$0xff]
  %v153 = vld [vmem:[%s1 + $0x430] sm:$0xff]
  %v154 = vld [vmem:[%s1 + $0x438] sm:$0xff]
  %v155 = vld [vmem:[%s1 + $0x440] sm:$0xff]
  %v156 = vld [vmem:[%s1 + $0x448] sm:$0xff]
  %v157 = vld [vmem:[%s1 + $0x450] sm:$0xff]
  %v158 = vld [vmem:[%s1 + $0x458] sm:$0xff]
  %v159 = vld [vmem:[%s1 + $0x460] sm:$0xff]
  %v160 = vld [vmem:[%s1 + $0x468] sm:$0xff]
  %v161 = vld [vmem:[%s1 + $0x470] sm:$0xff]
  %v162 = vld [vmem:[%s1 + $0x478] sm:$0xff]
  %v163 = vld [vmem:[%s1 + $0x480] sm:$0xff]
  %v164 = vld [vmem:[%s1 + $0x488] sm:$0xff]
  %v165 = vld [vmem:[%s1 + $0x490] sm:$0xff]
  %v166 = vld [vmem:[%s1 + $0x498] sm:$0xff]
  %v167 = vld [vmem:[%s1 + $0x4a0] sm:$0xff]
  %v168 = vld [vmem:[%s1 + $0x4a8] sm:$0xff]
  %v169 = vld [vmem:[%s1 + $0x4b0] sm:$0xff]
  %v170 = vld [vmem:[%s1 + $0x4b8] sm:$0xff]
  %v171 = vld [vmem:[%s1 + $0x4c0] sm:$0xff]
  %v172 = vld [vmem:[%s1 + $0x4c8] sm:$0xff]
  %v173 = vld [vmem:[%s1 + $0x4d0] sm:$0xff]
  %v174 = vld [vmem:[%s1 + $0x4d8] sm:$0xff]
  %v175 = vld [vmem:[%s1 + $0x4e0] sm:$0xff]
  %v176 = vld [vmem:[%s1 + $0x4e8] sm:$0xff]
  %v177 = vld [vmem:[%s1 + $0x4f0] sm:$0xff]
  %v178 = vld [vmem:[%s1 + $0x4f8] sm:$0xff]
  %v179 = vld [vmem:[%s1 + $0x500] sm:$0xff]
  %v180 = vld [vmem:[%s1 + $0x508] sm:$0xff]
  %v181 = vld [vmem:[%s1 + $0x510] sm:$0xff]
  %v182 = vld [vmem:[%s1 + $0x518] sm:$0xff]
  %v183 = vld [vmem:[%s1 + $0x520] sm:$0xff]
  %v184 = vld [vmem:[%s1 + $0x528] sm:$0xff]
  %v185 = vld [vmem:[%s1 + $0x530] sm:$0xff]
  %v186 = vld [vmem:[%s1 + $0x538] sm:$0xff]
  %v187 = vld [vmem:[%s1 + $0x540] sm:$0xff]
  %v188 = vld [vmem:[%s1 + $0x548] sm:$0xff]
  %v189 = vld [vmem:[%s1 + $0x550] sm:$0xff]
  %v190 = vld [vmem:[%s1 + $0x558] sm:$0xff]
  %v191 = vld [vmem:[%s1 + $0x560] sm:$0xff]
  %v192 = vld [vmem:[%s1 + $0x568] sm:$0xff]
  %v193 = vld [vmem:[%s1 + $0x570] sm:$0xff]
  %v194 = vld [vmem:[%s1 + $0x578] sm:$0xff]
  %v195 = vld [vmem:[%s1 + $0x580] sm:$0xff]
  %v196 = vld [vmem:[%s1 + $0x588] sm:$0xff]
  %v197 = vld [vmem:[%s1 + $0x590] sm:$0xff]
  %v198 = vld [vmem:[%s1 + $0x598] sm:$0xff]
  %v199 = vld [vmem:[%s1 + $0x5a0] sm:$0xff]
  %v200 = vld [vmem:[%s1 + $0x5a8] sm:$0xff]
  %v201 = vld [vmem:[%s1 + $0x5b0] sm:$0xff]
  %v202 = vld [vmem:[%s1 + $0x5b8] sm:$0xff]
  %v203 = vld [vmem:[%s1 + $0x5c0] sm:$0xff]
  %v204 = vld [vmem:[%s1 + $0x5c8] sm:$0xff]
  %v205 = vld [vmem:[%s1 + $0x5d0] sm:$0xff]
  %v206 = vld [vmem:[%s1 + $0x5d8] sm:$0xff]
  %v207 = vld [vmem:[%s1 + $0x5e0] sm:$0xff]
  %v208 = vld [vmem:[%s1 + $0x5e8] sm:$0xff]
  %v209 = vld [vmem:[%s1 + $0x5f0] sm:$0xff]
  %v210 = vld [vmem:[%s1 + $0x5f8] sm:$0xff]
  %v211 = vld [vmem:[%s1 + $0x600] sm:$0xff]
  %v212 = vld [vmem:[%s1 + $0x608] sm:$0xff]
  %v213 = vld [vmem:[%s1 + $0x610] sm:$0xff]
  %v214 = vld [vmem:[%s1 + $0x618] sm:$0xff]
  %v215 = vld [vmem:[%s1 + $0x620] sm:$0xff]
  %v216 = vld [vmem:[%s1 + $0x628] sm:$0xff]
  %v217 = vld [vmem:[%s1 + $0x630] sm:$0xff]
  %v218 = vld [vmem:[%s1 + $0x638] sm:$0xff]
  %v219 = vld [vmem:[%s1 + $0x640] sm:$0xff]
  %v220 = vld [vmem:[%s1 + $0x648] sm:$0xff]
  %v221 = vld [vmem:[%s1 + $0x650] sm:$0xff]
  %v222 = vld [vmem:[%s1 + $0x658] sm:$0xff]
  %v223 = vld [vmem:[%s1 + $0x660] sm:$0xff]
  %v224 = vld [vmem:[%s1 + $0x668] sm:$0xff]
  %v225 = vld [vmem:[%s1 + $0x670] sm:$0xff]
  %v226 = vld [vmem:[%s1 + $0x678] sm:$0xff]
  %v227 = vld [vmem:[%s1 + $0x680] sm:$0xff]
  %v228 = vld [vmem:[%s1 + $0x688] sm:$0xff]
  %v229 = vld [vmem:[%s1 + $0x690] sm:$0xff]
  %v230 = vld [vmem:[%s1 + $0x698] sm:$0xff]
  %v231 = vld [vmem:[%s1 + $0x6a0] sm:$0xff]
  %v232 = vld [vmem:[%s1 + $0x6a8] sm:$0xff]
  %v233 = vld [vmem:[%s1 + $0x6b0] sm:$0xff]
  %v234 = vld [vmem:[%s1 + $0x6b8] sm:$0xff]
  %v235 = vld [vmem:[%s1 + $0x6c0] sm:$0xff]
  %v236 = vld [vmem:[%s1 + $0x6c8] sm:$0xff]
  %v237 = vld [vmem:[%s1 + $0x6d0] sm:$0xff]
  %v238 = vld [vmem:[%s1 + $0x6d8] sm:$0xff]
  %v239 = vld [vmem:[%s1 + $0x6e0] sm:$0xff]
  %v240 = vld [vmem:[%s1 + $0x6e8] sm:$0xff]
  %v241 = vld [vmem:[%s1 + $0x6f0] sm:$0xff]
  %v242 = vld [vmem:[%s1 + $0x6f8] sm:$0xff]
  %v243 = vld [vmem:[%s1 + $0x700] sm:$0xff]
  %v244 = vld [vmem:[%s1 + $0x708] sm:$0xff]
  %v245 = vld [vmem:[%s1 + $0x710] sm:$0xff]
  %v246 = vld [vmem:[%s1 + $0x718] sm:$0xff]
  %v247 = vld [vmem:[%s1 + $0x720] sm:$0xff]
  %v248 = vld [vmem:[%s1 + $0x728] sm:$0xff]
  %v249 = vld [vmem:[%s1 + $0x730] sm:$0xff]
  %v250 = vld [vmem:[%s1 + $0x738] sm:$0xff]
  %v251 = vld [vmem:[%s1 + $0x740] sm:$0xff]
  %v252 = vld [vmem:[%s1 + $0x748] sm:$0xff]
  %v253 = vld [vmem:[%s1 + $0x750] sm:$0xff]
  %v254 = vld [vmem:[%s1 + $0x758] sm:$0xff]
  %v255 = vld [vmem:[%s1 + $0x760] sm:$0xff]
  %v256 = vld [vmem:[%s1 + $0x768] sm:$0xff]
  %v257 = vld [vmem:[%s1 + $0x770] sm:$0xff]
  %v258 = vld [vmem:[%s1 + $0x778] sm:$0xff]
  %v259 = vld [vmem:[%s1 + $0x780] sm:$0xff]
  %v260 = vld [vmem:[%s1 + $0x788] sm:$0xff]
  %v261 = vld [vmem:[%s1 + $0x790] sm:$0xff]
  %v262 = vld [vmem:[%s1 + $0x798] sm:$0xff]
  %v263 = vld [vmem:[%s1 + $0x7a0] sm:$0xff]
  %v264 = vld [vmem:[%s1 + $0x7a8] sm:$0xff]
  %v265 = vld [vmem:[%s1 + $0x7b0] sm:$0xff]
  %v266 = vld [vmem:[%s1 + $0x7b8] sm:$0xff]
  %v267 = vld [vmem:[%s1 + $0x7c0] sm:$0xff]
  %v268 = vld [vmem:[%s1 + $0x7c8] sm:$0xff]
  %v269 = vld [vmem:[%s1 + $0x7d0] sm:$0xff]
  %v270 = vld [vmem:[%s1 + $0x7d8] sm:$0xff]
  %v271 = vld [vmem:[%s1 + $0x7e0] sm:$0xff]
  %v272 = vld [vmem:[%s1 + $0x7e8] sm:$0xff]
  %v273 = vld [vmem:[%s1 + $0x7f0] sm:$0xff]
  %v274 = vld [vmem:[%s1 + $0x7f8] sm:$0xff]
  %v275 = vld [vmem:[%s1 + $0x800] sm:$0xff]
  %v276 = vld [vmem:[%s1 + $0x808] sm:$0xff]
  %v277 = vld [vmem:[%s1 + $0x810] sm:$0xff]
  %v278 = vld [vmem:[%s1 + $0x818] sm:$0xff]
  %v279 = vld [vmem:[%s1 + $0x820] sm:$0xff]
  %v280 = vld [vmem:[%s1 + $0x828] sm:$0xff]
  %v281 = vld [vmem:[%s1 + $0x830] sm:$0xff]
  %v282 = vld [vmem:[%s1 + $0x838] sm:$0xff]
  %v283 = vld [vmem:[%s1 + $0x840] sm:$0xff]
  %v284 = vld [vmem:[%s1 + $0x848] sm:$0xff]
  %v285 = vld [vmem:[%s1 + $0x850] sm:$0xff]
  %v286 = vld [vmem:[%s1 + $0x858] sm:$0xff]
  %v287 = vld [vmem:[%s1 + $0x860] sm:$0xff]
  %v288 = vld [vmem:[%s1 + $0x868] sm:$0xff]
  %v289 = vld [vmem:[%s1 + $0x870] sm:$0xff]
  %v290 = vld [vmem:[%s1 + $0x878] sm:$0xff]
  %v291 = vld [vmem:[%s1 + $0x880] sm:$0xff]
  %v292 = vld [vmem:[%s1 + $0x888] sm:$0xff]
  %v293 = vld [vmem:[%s1 + $0x890] sm:$0xff]
  %v294 = vld [vmem:[%s1 + $0x898] sm:$0xff]
  %v295 = vld [vmem:[%s1 + $0x8a0] sm:$0xff]
  %v296 = vld [vmem:[%s1 + $0x8a8] sm:$0xff]
  %v297 = vld [vmem:[%s1 + $0x8b0] sm:$0xff]
  %v298 = vld [vmem:[%s1 + $0x8b8] sm:$0xff]
  %v299 = vld [vmem:[%s1 + $0x8c0] sm:$0xff]
  %v300 = vld [vmem:[%s1 + $0x8c8] sm:$0xff]
  %v301 = vld [vmem:[%s1 + $0x8d0] sm:$0xff]
  %v302 = vld [vmem:[%s1 + $0x8d8] sm:$0xff]
  %v303 = vld [vmem:[%s1 + $0x8e0] sm:$0xff]
  %v304 = vld [vmem:[%s1 + $0x8e8] sm:$0xff]
  %v305 = vld [vmem:[%s1 + $0x8f0] sm:$0xff]
  %v306 = vld [vmem:[%s1 + $0x8f8] sm:$0xff]
  %v307 = vld [vmem:[%s1 + $0x900] sm:$0xff]
  %v308 = vld [vmem:[%s1 + $0x908] sm:$0xff]
  %v309 = vld [vmem:[%s1 + $0x910] sm:$0xff]
  %v310 = vld [vmem:[%s1 + $0x918] sm:$0xff]
  %v311 = vld [vmem:[%s1 + $0x920] sm:$0xff]
  %v312 = vld [vmem:[%s1 + $0x928] sm:$0xff]
  %v313 = vld [vmem:[%s1 + $0x930] sm:$0xff]
  %v314 = vld [vmem:[%s1 + $0x938] sm:$0xff]
  %v315 = vld [vmem:[%s1 + $0x940] sm:$0xff]
  %v316 = vld [vmem:[%s1 + $0x948] sm:$0xff]
  %v317 = vld [vmem:[%s1 + $0x950] sm:$0xff]
  %v318 = vld [vmem:[%s1 + $0x958] sm:$0xff]
  %v319 = vld [vmem:[%s1 + $0x960] sm:$0xff]
  %v320 = vld [vmem:[%s1 + $0x968] sm:$0xff]
  %v321 = vld [vmem:[%s1 + $0x970] sm:$0xff]
  %v322 = vld [vmem:[%s1 + $0x978] sm:$0xff]
  %v323 = vld [vmem:[%s1 + $0x980] sm:$0xff]
  %v324 = vld [vmem:[%s1 + $0x988] sm:$0xff]
  %v325 = vld [vmem:[%s1 + $0x990] sm:$0xff]
  %v326 = vld [vmem:[%s1 + $0x998] sm:$0xff]
  %v327 = vld [vmem:[%s1 + $0x9a0] sm:$0xff]
  %v328 = vld [vmem:[%s1 + $0x9a8] sm:$0xff]
  %v329 = vld [vmem:[%s1 + $0x9b0] sm:$0xff]
  %v330 = vld [vmem:[%s1 + $0x9b8] sm:$0xff]
  %v331 = vld [vmem:[%s1 + $0x9c0] sm:$0xff]
  %v332 = vld [vmem:[%s1 + $0x9c8] sm:$0xff]
  %v333 = vld [vmem:[%s1 + $0x9d0] sm:$0xff]
  %v334 = vld [vmem:[%s1 + $0x9d8] sm:$0xff]
  %v335 = vld [vmem:[%s1 + $0x9e0] sm:$0xff]
  %v336 = vld [vmem:[%s1 + $0x9e8] sm:$0xff]
  %v337 = vld [vmem:[%s1 + $0x9f0] sm:$0xff]
  %v338 = vld [vmem:[%s1 + $0x9f8] sm:$0xff]
  %v339 = vld [vmem:[%s1 + $0xa00] sm:$0xff]
  %v340 = vld [vmem:[%s1 + $0xa08] sm:$0xff]
  %v341 = vld [vmem:[%s1 + $0xa10] sm:$0xff]
  %v342 = vld [vmem:[%s1 + $0xa18] sm:$0xff]
  %v343 = vld [vmem:[%s1 + $0xa20] sm:$0xff]
  %v344 = vld [vmem:[%s1 + $0xa28] sm:$0xff]
  %v345 = vld [vmem:[%s1 + $0xa30] sm:$0xff]
  %v346 = vld [vmem:[%s1 + $0xa38] sm:$0xff]
  %v347 = vld [vmem:[%s1 + $0xa40] sm:$0xff]
  %v348 = vld [vmem:[%s1 + $0xa48] sm:$0xff]
  %v349 = vld [vmem:[%s1 + $0xa50] sm:$0xff]
  %v350 = vld [vmem:[%s1 + $0xa58] sm:$0xff]
  %v351 = vld [vmem:[%s1 + $0xa60] sm:$0xff]
  %v352 = vld [vmem:[%s1 + $0xa68] sm:$0xff]
  %v353 = vld [vmem:[%s1 + $0xa70] sm:$0xff]
  %v354 = vld [vmem:[%s1 + $0xa78] sm:$0xff]
  %v355 = vld [vmem:[%s1 + $0xa80] sm:$0xff]
  %v356 = vld [vmem:[%s1 + $0xa88] sm:$0xff]
  %v357 = vld [vmem:[%s1 + $0xa90] sm:$0xff]
  %v358 = vld [vmem:[%s1 + $0xa98] sm:$0xff]
  %v359 = vld [vmem:[%s1 + $0xaa0] sm:$0xff]
  %v360 = vld [vmem:[%s1 + $0xaa8] sm:$0xff]
  %v361 = vld [vmem:[%s1 + $0xab0] sm:$0xff]
  %v362 = vld [vmem:[%s1 + $0xab8] sm:$0xff]
  %v363 = vld [vmem:[%s1 + $0xac0] sm:$0xff]
  %v364 = vld [vmem:[%s1 + $0xac8] sm:$0xff]
  %v365 = vld [vmem:[%s1 + $0xad0] sm:$0xff]
  %v366 = vld [vmem:[%s1 + $0xad8] sm:$0xff]
  %v367 = vld [vmem:[%s1 + $0xae0] sm:$0xff]
  %v368 = vld [vmem:[%s1 + $0xae8] sm:$0xff]
  %v369 = vld [vmem:[%s1 + $0xaf0] sm:$0xff]
  %v370 = vld [vmem:[%s1 + $0xaf8] sm:$0xff]
  %v371 = vld [vmem:[%s1 + $0xb00] sm:$0xff]
  %v372 = vld [vmem:[%s1 + $0xb08] sm:$0xff]
  %v373 = vld [vmem:[%s1 + $0xb10] sm:$0xff]
  %v374 = vld [vmem:[%s1 + $0xb18] sm:$0xff]
  %v375 = vld [vmem:[%s1 + $0xb20] sm:$0xff]
  %v376 = vld [vmem:[%s1 + $0xb28] sm:$0xff]
  %v377 = vld [vmem:[%s1 + $0xb30] sm:$0xff]
  %v378 = vld [vmem:[%s1 + $0xb38] sm:$0xff]
  %v379 = vld [vmem:[%s1 + $0xb40] sm:$0xff]
  %v380 = vld [vmem:[%s1 + $0xb48] sm:$0xff]
  %v381 = vld [vmem:[%s1 + $0xb50] sm:$0xff]
  %v382 = vld [vmem:[%s1 + $0xb58] sm:$0xff]
  %v383 = vld [vmem:[%s1 + $0xb60] sm:$0xff]
  %v384 = vld [vmem:[%s1 + $0xb68] sm:$0xff]
  %v385 = vld [vmem:[%s1 + $0xb70] sm:$0xff]
  %v386 = vld [vmem:[%s1 + $0xb78] sm:$0xff]
  %v387 = vld [vmem:[%s1 + $0xb80] sm:$0xff]
  %v388 = vld [vmem:[%s1 + $0xb88] sm:$0xff]
  %v389 = vld [vmem:[%s1 + $0xb90] sm:$0xff]
  %v390 = vld [vmem:[%s1 + $0xb98] sm:$0xff]
  %v391 = vld [vmem:[%s1 + $0xba0] sm:$0xff]
  %v392 = vld [vmem:[%s1 + $0xba8] sm:$0xff]
  %v393 = vld [vmem:[%s1 + $0xbb0] sm:$0xff]
  %v394 = vld [vmem:[%s1 + $0xbb8] sm:$0xff]
  %v395 = vld [vmem:[%s1 + $0xbc0] sm:$0xff]
  %v396 = vld [vmem:[%s1 + $0xbc8] sm:$0xff]
  %v397 = vld [vmem:[%s1 + $0xbd0] sm:$0xff]
  %v398 = vld [vmem:[%s1 + $0xbd8] sm:$0xff]
  %v399 = vld [vmem:[%s1 + $0xbe0] sm:$0xff]
  %v400 = vld [vmem:[%s1 + $0xbe8] sm:$0xff]
  %v401 = vld [vmem:[%s1 + $0xbf0] sm:$0xff]
  %v402 = vld [vmem:[%s1 + $0xbf8] sm:$0xff]
  %v403 = vld [vmem:[%s1 + $0xc00] sm:$0xff]
  %v404 = vld [vmem:[%s1 + $0xc08] sm:$0xff]
  %v405 = vld [vmem:[%s1 + $0xc10] sm:$0xff]
  %v406 = vld [vmem:[%s1 + $0xc18] sm:$0xff]
  %v407 = vld [vmem:[%s1 + $0xc20] sm:$0xff]
  %v408 = vld [vmem:[%s1 + $0xc28] sm:$0xff]
  %v409 = vld [vmem:[%s1 + $0xc30] sm:$0xff]
  %v410 = vld [vmem:[%s1 + $0xc38] sm:$0xff]
  %v411 = vld [vmem:[%s1 + $0xc40] sm:$0xff]
  %v412 = vld [vmem:[%s1 + $0xc48] sm:$0xff]
  %v413 = vld [vmem:[%s1 + $0xc50] sm:$0xff]
  %v414 = vld [vmem:[%s1 + $0xc58] sm:$0xff]
  %v415 = vld [vmem:[%s1 + $0xc60] sm:$0xff]
  %v416 = vld [vmem:[%s1 + $0xc68] sm:$0xff]
  %v417 = vld [vmem:[%s1 + $0xc70] sm:$0xff]
  %v418 = vld [vmem:[%s1 + $0xc78] sm:$0xff]
  %v419 = vld [vmem:[%s1 + $0xc80] sm:$0xff]
  %v420 = vld [vmem:[%s1 + $0xc88] sm:$0xff]
  %v421 = vld [vmem:[%s1 + $0xc90] sm:$0xff]
  %v422 = vld [vmem:[%s1 + $0xc98] sm:$0xff]
  %v423 = vld [vmem:[%s1 + $0xca0] sm:$0xff]
  %v424 = vld [vmem:[%s1 + $0xca8] sm:$0xff]
  %v425 = vld [vmem:[%s1 + $0xcb0] sm:$0xff]
  %v426 = vld [vmem:[%s1 + $0xcb8] sm:$0xff]
  %v427 = vld [vmem:[%s1 + $0xcc0] sm:$0xff]
  %v428 = vld [vmem:[%s1 + $0xcc8] sm:$0xff]
  %v429 = vld [vmem:[%s1 + $0xcd0] sm:$0xff]
  %v430 = vld [vmem:[%s1 + $0xcd8] sm:$0xff]
  %v431 = vld [vmem:[%s1 + $0xce0] sm:$0xff]
  %v432 = vld [vmem:[%s1 + $0xce8] sm:$0xff]
  %v433 = vld [vmem:[%s1 + $0xcf0] sm:$0xff]
  %v434 = vld [vmem:[%s1 + $0xcf8] sm:$0xff]
  %v435 = vld [vmem:[%s1 + $0xd00] sm:$0xff]
  %v436 = vld [vmem:[%s1 + $0xd08] sm:$0xff]
  %v437 = vld [vmem:[%s1 + $0xd10] sm:$0xff]
  %v438 = vld [vmem:[%s1 + $0xd18] sm:$0xff]
  %v439 = vld [vmem:[%s1 + $0xd20] sm:$0xff]
  %v440 = vld [vmem:[%s1 + $0xd28] sm:$0xff]
  %v441 = vld [vmem:[%s1 + $0xd30] sm:$0xff]
  %v442 = vld [vmem:[%s1 + $0xd38] sm:$0xff]
  %v443 = vld [vmem:[%s1 + $0xd40] sm:$0xff]
  %v444 = vld [vmem:[%s1 + $0xd48] sm:$0xff]
  %v445 = vld [vmem:[%s1 + $0xd50] sm:$0xff]
  %v446 = vld [vmem:[%s1 + $0xd58] sm:$0xff]
  %v447 = vld [vmem:[%s1 + $0xd60] sm:$0xff]
  %v448 = vld [vmem:[%s1 + $0xd68] sm:$0xff]
  %v449 = vld [vmem:[%s1 + $0xd70] sm:$0xff]
  %v450 = vld [vmem:[%s1 + $0xd78] sm:$0xff]
  %v451 = vld [vmem:[%s1 + $0xd80] sm:$0xff]
  %v452 = vld [vmem:[%s1 + $0xd88] sm:$0xff]
  %v453 = vld [vmem:[%s1 + $0xd90] sm:$0xff]
  %v454 = vld [vmem:[%s1 + $0xd98] sm:$0xff]
  %v455 = vld [vmem:[%s1 + $0xda0] sm:$0xff]
  %v456 = vld [vmem:[%s1 + $0xda8] sm:$0xff]
  %v457 = vld [vmem:[%s1 + $0xdb0] sm:$0xff]
  %v458 = vld [vmem:[%s1 + $0xdb8] sm:$0xff]
  %v459 = vld [vmem:[%s1 + $0xdc0] sm:$0xff]
  %v460 = vld [vmem:[%s1 + $0xdc8] sm:$0xff]
  %v461 = vld [vmem:[%s1 + $0xdd0] sm:$0xff]
  %v462 = vld [vmem:[%s1 + $0xdd8] sm:$0xff]
  %v463 = vld [vmem:[%s1 + $0xde0] sm:$0xff]
  %v464 = vld [vmem:[%s1 + $0xde8] sm:$0xff]
  %v465 = vld [vmem:[%s1 + $0xdf0] sm:$0xff]
  %v466 = vld [vmem:[%s1 + $0xdf8] sm:$0xff]
  %v467 = vld [vmem:[%s1 + $0xe00] sm:$0xff]
  %v468 = vld [vmem:[%s1 + $0xe08] sm:$0xff]
  %v469 = vld [vmem:[%s1 + $0xe10] sm:$0xff]
  %v470 = vld [vmem:[%s1 + $0xe18] sm:$0xff]
  %v471 = vld [vmem:[%s1 + $0xe20] sm:$0xff]
  %v472 = vld [vmem:[%s1 + $0xe28] sm:$0xff]
  %v473 = vld [vmem:[%s1 + $0xe30] sm:$0xff]
  %v474 = vld [vmem:[%s1 + $0xe38] sm:$0xff]
  %v475 = vld [vmem:[%s1 + $0xe40] sm:$0xff]
  %v476 = vld [vmem:[%s1 + $0xe48] sm:$0xff]
  %v477 = vld [vmem:[%s1 + $0xe50] sm:$0xff]
  %v478 = vld [vmem:[%s1 + $0xe58] sm:$0xff]
  %v479 = vld [vmem:[%s1 + $0xe60] sm:$0xff]
  %v480 = vld [vmem:[%s1 + $0xe68] sm:$0xff]
  %v481 = vld [vmem:[%s1 + $0xe70] sm:$0xff]
  %v482 = vld [vmem:[%s1 + $0xe78] sm:$0xff]
  %v483 = vld [vmem:[%s1 + $0xe80] sm:$0xff]
  %v484 = vld [vmem:[%s1 + $0xe88] sm:$0xff]
  %v485 = vld [vmem:[%s1 + $0xe90] sm:$0xff]
  %v486 = vld [vmem:[%s1 + $0xe98] sm:$0xff]
  %v487 = vld [vmem:[%s1 + $0xea0] sm:$0xff]
  %v488 = vld [vmem:[%s1 + $0xea8] sm:$0xff]
  %v489 = vld [vmem:[%s1 + $0xeb0] sm:$0xff]
  %v490 = vld [vmem:[%s1 + $0xeb8] sm:$0xff]
  %v491 = vld [vmem:[%s1 + $0xec0] sm:$0xff]
  %v492 = vld [vmem:[%s1 + $0xec8] sm:$0xff]
  %v493 = vld [vmem:[%s1 + $0xed0] sm:$0xff]
  %v494 = vld [vmem:[%s1 + $0xed8] sm:$0xff]
  %v495 = vld [vmem:[%s1 + $0xee0] sm:$0xff]
  %v496 = vld [vmem:[%s1 + $0xee8] sm:$0xff]
  %v497 = vld [vmem:[%s1 + $0xef0] sm:$0xff]
  %v498 = vld [vmem:[%s1 + $0xef8] sm:$0xff]
  %v499 = vld [vmem:[%s1 + $0xf00] sm:$0xff]
  %v500 = vld [vmem:[%s1 + $0xf08] sm:$0xff]
  %v501 = vld [vmem:[%s1 + $0xf10] sm:$0xff]
  %v502 = vld [vmem:[%s1 + $0xf18] sm:$0xff]
  %v503 = vld [vmem:[%s1 + $0xf20] sm:$0xff]
  %v504 = vld [vmem:[%s1 + $0xf28] sm:$0xff]
  %v505 = vld [vmem:[%s1 + $0xf30] sm:$0xff]
  %v506 = vld [vmem:[%s1 + $0xf38] sm:$0xff]
  %v507 = vld [vmem:[%s1 + $0xf40] sm:$0xff]
  %v508 = vld [vmem:[%s1 + $0xf48] sm:$0xff]
  %v509 = vld [vmem:[%s1 + $0xf50] sm:$0xff]
  %v510 = vld [vmem:[%s1 + $0xf58] sm:$0xff]
  %v511 = vld [vmem:[%s1 + $0xf60] sm:$0xff]
  %v512 = vld [vmem:[%s1 + $0xf68] sm:$0xff]
  %v513 = vld [vmem:[%s1 + $0xf70] sm:$0xff]
  %v514 = vld [vmem:[%s1 + $0xf78] sm:$0xff]
  %v515 = vld [vmem:[%s1 + $0xf80] sm:$0xff]
  %v516 = vld [vmem:[%s1 + $0xf88] sm:$0xff]
  %v517 = vld [vmem:[%s1 + $0xf90] sm:$0xff]
  %v518 = vld [vmem:[%s1 + $0xf98] sm:$0xff]
  %v519 = vld [vmem:[%s1 + $0xfa0] sm:$0xff]
  %v520 = vld [vmem:[%s1 + $0xfa8] sm:$0xff]
  %v521 = vld [vmem:[%s1 + $0xfb0] sm:$0xff]
  %v522 = vld [vmem:[%s1 + $0xfb8] sm:$0xff]
  %v523 = vld [vmem:[%s1 + $0xfc0] sm:$0xff]
  %v524 = vld [vmem:[%s1 + $0xfc8] sm:$0xff]
  %v525 = vld [vmem:[%s1 + $0xfd0] sm:$0xff]
  %v526 = vld [vmem:[%s1 + $0xfd8] sm:$0xff]
  %v527 = vld [vmem:[%s1 + $0xfe0] sm:$0xff]
  %v528 = vld [vmem:[%s1 + $0xfe8] sm:$0xff]
  %v529 = vld [vmem:[%s1 + $0xff0] sm:$0xff]
  %v530 = vld [vmem:[%s1 + $0xff8] sm:$0xff]
  %s531 = sld [smem:[#allocation2]]
  %v532 = vstv %s531
  %v537 = vlaneseq
  %v538 = vshrl.u32 %v537, 7
  %v539 = vsub.s32 0, %v538
  %v540 = vrot.slane %v15, %v539
  %v541 = vlaneseq
  %v542 = vshrl.u32 %v541, 7
  %v543 = vsub.s32 1, %v542
  %v544 = vrot.slane %v15, %v543
  %v545 = vlaneseq
  %v546 = vshrl.u32 %v545, 7
  %v547 = vsub.s32 2, %v546
  %v548 = vrot.slane %v15, %v547
  %v549 = vlaneseq
  %v550 = vshrl.u32 %v549, 7
  %v551 = vsub.s32 3, %v550
  %v552 = vrot.slane %v15, %v551
  %v553 = vlaneseq
  %v554 = vshrl.u32 %v553, 7
  %v555 = vsub.s32 4, %v554
  %v556 = vrot.slane %v15, %v555
  %v557 = vlaneseq
  %v558 = vshrl.u32 %v557, 7
  %v559 = vsub.s32 5, %v558
  %v560 = vrot.slane %v15, %v559
  %v561 = vlaneseq
  %v562 = vshrl.u32 %v561, 7
  %v563 = vsub.s32 6, %v562
  %v564 = vrot.slane %v15, %v563
  %v565 = vlaneseq
  %v566 = vshrl.u32 %v565, 7
  %v567 = vsub.s32 7, %v566
  %v568 = vrot.slane %v15, %v567
  %v569 = vlaneseq
  %v570 = vshrl.u32 %v569, 7
  %v571 = vsub.s32 0, %v570
  %v572 = vrot.slane %v16, %v571
  %v573 = vlaneseq
  %v574 = vshrl.u32 %v573, 7
  %v575 = vsub.s32 1, %v574
  %v576 = vrot.slane %v16, %v575
  %v577 = vlaneseq
  %v578 = vshrl.u32 %v577, 7
  %v579 = vsub.s32 2, %v578
  %v580 = vrot.slane %v16, %v579
  %v581 = vlaneseq
  %v582 = vshrl.u32 %v581, 7
  %v583 = vsub.s32 3, %v582
  %v584 = vrot.slane %v16, %v583
  %v585 = vlaneseq
  %v586 = vshrl.u32 %v585, 7
  %v587 = vsub.s32 4, %v586
  %v588 = vrot.slane %v16, %v587
  %v589 = vlaneseq
  %v590 = vshrl.u32 %v589, 7
  %v591 = vsub.s32 5, %v590
  %v592 = vrot.slane %v16, %v591
  %v593 = vlaneseq
  %v594 = vshrl.u32 %v593, 7
  %v595 = vsub.s32 6, %v594
  %v596 = vrot.slane %v16, %v595
  %v597 = vlaneseq
  %v598 = vshrl.u32 %v597, 7
  %v599 = vsub.s32 7, %v598
  %v600 = vrot.slane %v16, %v599
  %v601 = vlaneseq
  %v602 = vshrl.u32 %v601, 7
  %v603 = vsub.s32 0, %v602
  %v604 = vrot.slane %v17, %v603
  %v605 = vlaneseq
  %v606 = vshrl.u32 %v605, 7
  %v607 = vsub.s32 1, %v606
  %v608 = vrot.slane %v17, %v607
  %v609 = vlaneseq
  %v610 = vshrl.u32 %v609, 7
  %v611 = vsub.s32 2, %v610
  %v612 = vrot.slane %v17, %v611
  %v613 = vlaneseq
  %v614 = vshrl.u32 %v613, 7
  %v615 = vsub.s32 3, %v614
  %v616 = vrot.slane %v17, %v615
  %v617 = vlaneseq
  %v618 = vshrl.u32 %v617, 7
  %v619 = vsub.s32 4, %v618
  %v620 = vrot.slane %v17, %v619
  %v621 = vlaneseq
  %v622 = vshrl.u32 %v621, 7
  %v623 = vsub.s32 5, %v622
  %v624 = vrot.slane %v17, %v623
  %v625 = vlaneseq
  %v626 = vshrl.u32 %v625, 7
  %v627 = vsub.s32 6, %v626
  %v628 = vrot.slane %v17, %v627
  %v629 = vlaneseq
  %v630 = vshrl.u32 %v629, 7
  %v631 = vsub.s32 7, %v630
  %v632 = vrot.slane %v17, %v631
  %v633 = vlaneseq
  %v634 = vshrl.u32 %v633, 7
  %v635 = vsub.s32 0, %v634
  %v636 = vrot.slane %v18, %v635
  %v637 = vlaneseq
  %v638 = vshrl.u32 %v637, 7
  %v639 = vsub.s32 1, %v638
  %v640 = vrot.slane %v18, %v639
  %v641 = vlaneseq
  %v642 = vshrl.u32 %v641, 7
  %v643 = vsub.s32 2, %v642
  %v644 = vrot.slane %v18, %v643
  %v645 = vlaneseq
  %v646 = vshrl.u32 %v645, 7
  %v647 = vsub.s32 3, %v646
  %v648 = vrot.slane %v18, %v647
  %v649 = vlaneseq
  %v650 = vshrl.u32 %v649, 7
  %v651 = vsub.s32 4, %v650
  %v652 = vrot.slane %v18, %v651
  %v653 = vlaneseq
  %v654 = vshrl.u32 %v653, 7
  %v655 = vsub.s32 5, %v654
  %v656 = vrot.slane %v18, %v655
  %v657 = vlaneseq
  %v658 = vshrl.u32 %v657, 7
  %v659 = vsub.s32 6, %v658
  %v660 = vrot.slane %v18, %v659
  %v661 = vlaneseq
  %v662 = vshrl.u32 %v661, 7
  %v663 = vsub.s32 7, %v662
  %v664 = vrot.slane %v18, %v663
  %697 = vmatprep.subr.mxu0 0.0
  %698 = vmatpush1.msra.mxu0 %v19
  %699 = vmatprep.subr.mxu0 0.0
  %700 = vmatpush1.msra.mxu0 %v20
  %701 = vmatprep.subr.mxu0 0.0
  %702 = vmatpush1.msra.mxu0 %v21
  %703 = vmatprep.subr.mxu0 0.0
  %704 = vmatpush1.msra.mxu0 %v22
  %705 = vmatprep.subr.mxu0 0.0
  %706 = vmatpush1.msra.mxu0 %v23
  %707 = vmatprep.subr.mxu0 0.0
  %708 = vmatpush1.msra.mxu0 %v24
  %709 = vmatprep.subr.mxu0 0.0
  %710 = vmatpush1.msra.mxu0 %v25
  %711 = vmatprep.subr.mxu0 0.0
  %712 = vmatpush1.msra.mxu0 %v26
  %713 = vmatprep.subr.mxu0 0.0
  %714 = vmatpush1.msra.mxu0 %v27
  %715 = vmatprep.subr.mxu0 0.0
  %716 = vmatpush1.msra.mxu0 %v28
  %717 = vmatprep.subr.mxu0 0.0
  %718 = vmatpush1.msra.mxu0 %v29
  %719 = vmatprep.subr.mxu0 0.0
  %720 = vmatpush1.msra.mxu0 %v30
  %721 = vmatprep.subr.mxu0 0.0
  %722 = vmatpush1.msra.mxu0 %v31
  %723 = vmatprep.subr.mxu0 0.0
  %724 = vmatpush1.msra.mxu0 %v32
  %725 = vmatprep.subr.mxu0 0.0
  %726 = vmatpush1.msra.mxu0 %v33
  %727 = vmatprep.subr.mxu0 0.0
  %728 = vmatpush1.msra.mxu0 %v34
  %729 = vmatprep.subr.mxu0 0.0
  %730 = vmatpush1.msra.mxu0 %v35
  %731 = vmatprep.subr.mxu0 0.0
  %732 = vmatpush1.msra.mxu0 %v36
  %733 = vmatprep.subr.mxu0 0.0
  %734 = vmatpush1.msra.mxu0 %v37
  %735 = vmatprep.subr.mxu0 0.0
  %736 = vmatpush1.msra.mxu0 %v38
  %737 = vmatprep.subr.mxu0 0.0
  %738 = vmatpush1.msra.mxu0 %v39
  %739 = vmatprep.subr.mxu0 0.0
  %740 = vmatpush1.msra.mxu0 %v40
  %741 = vmatprep.subr.mxu0 0.0
  %742 = vmatpush1.msra.mxu0 %v41
  %743 = vmatprep.subr.mxu0 0.0
  %744 = vmatpush1.msra.mxu0 %v42
  %745 = vmatprep.subr.mxu0 0.0
  %746 = vmatpush1.msra.mxu0 %v43
  %747 = vmatprep.subr.mxu0 0.0
  %748 = vmatpush1.msra.mxu0 %v44
  %749 = vmatprep.subr.mxu0 0.0
  %750 = vmatpush1.msra.mxu0 %v45
  %751 = vmatprep.subr.mxu0 0.0
  %752 = vmatpush1.msra.mxu0 %v46
  %753 = vmatprep.subr.mxu0 0.0
  %754 = vmatpush1.msra.mxu0 %v47
  %755 = vmatprep.subr.mxu0 0.0
  %756 = vmatpush1.msra.mxu0 %v48
  %757 = vmatprep.subr.mxu0 0.0
  %758 = vmatpush1.msra.mxu0 %v49
  %759 = vmatprep.subr.mxu0 0.0
  %760 = vmatpush1.msra.mxu0 %v50
  %761 = vmatprep.mubr.f32.mxu0 %v544
  %762 = vmatmul.mubr.f32.gmra.mrb[0].mxu0 %v540
  %v763 = vpop.f32.mrb[0].mxu0
  %v764 = vadd.f32 %v532, %v763
  %v765 = vpop.f32.mrb[0].mxu0
  %766 = vdwg.mxu0
  %767 = vmatprep.subr.mxu0 0.0
  %768 = vmatpush1.msra.mxu0 %v51
  %769 = vmatprep.subr.mxu0 0.0
  %770 = vmatpush1.msra.mxu0 %v52
  %771 = vmatprep.subr.mxu0 0.0
  %772 = vmatpush1.msra.mxu0 %v53
  %773 = vmatprep.subr.mxu0 0.0
  %774 = vmatpush1.msra.mxu0 %v54
  %775 = vmatprep.subr.mxu0 0.0
  %776 = vmatpush1.msra.mxu0 %v55
  %777 = vmatprep.subr.mxu0 0.0
  %778 = vmatpush1.msra.mxu0 %v56
  %779 = vmatprep.subr.mxu0 0.0
  %780 = vmatpush1.msra.mxu0 %v57
  %781 = vmatprep.subr.mxu0 0.0
  %782 = vmatpush1.msra.mxu0 %v58
  %783 = vmatprep.subr.mxu0 0.0
  %784 = vmatpush1.msra.mxu0 %v59
  %785 = vmatprep.subr.mxu0 0.0
  %786 = vmatpush1.msra.mxu0 %v60
  %787 = vmatprep.subr.mxu0 0.0
  %788 = vmatpush1.msra.mxu0 %v61
  %789 = vmatprep.subr.mxu0 0.0
  %790 = vmatpush1.msra.mxu0 %v62
  %791 = vmatprep.subr.mxu0 0.0
  %792 = vmatpush1.msra.mxu0 %v63
  %793 = vmatprep.subr.mxu0 0.0
  %794 = vmatpush1.msra.mxu0 %v64
  %795 = vmatprep.subr.mxu0 0.0
  %796 = vmatpush1.msra.mxu0 %v65
  %797 = vmatprep.subr.mxu0 0.0
  %798 = vmatpush1.msra.mxu0 %v66
  %799 = vmatprep.subr.mxu0 0.0
  %800 = vmatpush1.msra.mxu0 %v67
  %801 = vmatprep.subr.mxu0 0.0
  %802 = vmatpush1.msra.mxu0 %v68
  %803 = vmatprep.subr.mxu0 0.0
  %804 = vmatpush1.msra.mxu0 %v69
  %805 = vmatprep.subr.mxu0 0.0
  %806 = vmatpush1.msra.mxu0 %v70
  %807 = vmatprep.subr.mxu0 0.0
  %808 = vmatpush1.msra.mxu0 %v71
  %809 = vmatprep.subr.mxu0 0.0
  %810 = vmatpush1.msra.mxu0 %v72
  %811 = vmatprep.subr.mxu0 0.0
  %812 = vmatpush1.msra.mxu0 %v73
  %813 = vmatprep.subr.mxu0 0.0
  %814 = vmatpush1.msra.mxu0 %v74
  %815 = vmatprep.subr.mxu0 0.0
  %816 = vmatpush1.msra.mxu0 %v75
  %817 = vmatprep.subr.mxu0 0.0
  %818 = vmatpush1.msra.mxu0 %v76
  %819 = vmatprep.subr.mxu0 0.0
  %820 = vmatpush1.msra.mxu0 %v77
  %821 = vmatprep.subr.mxu0 0.0
  %822 = vmatpush1.msra.mxu0 %v78
  %823 = vmatprep.subr.mxu0 0.0
  %824 = vmatpush1.msra.mxu0 %v79
  %825 = vmatprep.subr.mxu0 0.0
  %826 = vmatpush1.msra.mxu0 %v80
  %827 = vmatprep.subr.mxu0 0.0
  %828 = vmatpush1.msra.mxu0 %v81
  %829 = vmatprep.subr.mxu0 0.0
  %830 = vmatpush1.msra.mxu0 %v82
  %831 = vmatprep.mubr.f32.mxu0 %v552
  %832 = vmatmul.mubr.f32.gmra.mrb[0].mxu0 %v548
  %v833 = vpop.f32.mrb[0].mxu0
  %v834 = vadd.f32 %v764, %v833
  %v835 = vpop.f32.mrb[0].mxu0
  %836 = vdwg.mxu0
  %837 = vmatprep.subr.mxu0 0.0
  %838 = vmatpush1.msra.mxu0 %v83
  %839 = vmatprep.subr.mxu0 0.0
  %840 = vmatpush1.msra.mxu0 %v84
  %841 = vmatprep.subr.mxu0 0.0
  %842 = vmatpush1.msra.mxu0 %v85
  %843 = vmatprep.subr.mxu0 0.0
  %844 = vmatpush1.msra.mxu0 %v86
  %845 = vmatprep.subr.mxu0 0.0
  %846 = vmatpush1.msra.mxu0 %v87
  %847 = vmatprep.subr.mxu0 0.0
  %848 = vmatpush1.msra.mxu0 %v88
  %849 = vmatprep.subr.mxu0 0.0
  %850 = vmatpush1.msra.mxu0 %v89
  %851 = vmatprep.subr.mxu0 0.0
  %852 = vmatpush1.msra.mxu0 %v90
  %853 = vmatprep.subr.mxu0 0.0
  %854 = vmatpush1.msra.mxu0 %v91
  %855 = vmatprep.subr.mxu0 0.0
  %856 = vmatpush1.msra.mxu0 %v92
  %857 = vmatprep.subr.mxu0 0.0
  %858 = vmatpush1.msra.mxu0 %v93
  %859 = vmatprep.subr.mxu0 0.0
  %860 = vmatpush1.msra.mxu0 %v94
  %861 = vmatprep.subr.mxu0 0.0
  %862 = vmatpush1.msra.mxu0 %v95
  %863 = vmatprep.subr.mxu0 0.0
  %864 = vmatpush1.msra.mxu0 %v96
  %865 = vmatprep.subr.mxu0 0.0
  %866 = vmatpush1.msra.mxu0 %v97
  %867 = vmatprep.subr.mxu0 0.0
  %868 = vmatpush1.msra.mxu0 %v98
  %869 = vmatprep.subr.mxu0 0.0
  %870 = vmatpush1.msra.mxu0 %v99
  %871 = vmatprep.subr.mxu0 0.0
  %872 = vmatpush1.msra.mxu0 %v100
  %873 = vmatprep.subr.mxu0 0.0
  %874 = vmatpush1.msra.mxu0 %v101
  %875 = vmatprep.subr.mxu0 0.0
  %876 = vmatpush1.msra.mxu0 %v102
  %877 = vmatprep.subr.mxu0 0.0
  %878 = vmatpush1.msra.mxu0 %v103
  %879 = vmatprep.subr.mxu0 0.0
  %880 = vmatpush1.msra.mxu0 %v104
  %881 = vmatprep.subr.mxu0 0.0
  %882 = vmatpush1.msra.mxu0 %v105
  %883 = vmatprep.subr.mxu0 0.0
  %884 = vmatpush1.msra.mxu0 %v106
  %885 = vmatprep.subr.mxu0 0.0
  %886 = vmatpush1.msra.mxu0 %v107
  %887 = vmatprep.subr.mxu0 0.0
  %888 = vmatpush1.msra.mxu0 %v108
  %889 = vmatprep.subr.mxu0 0.0
  %890 = vmatpush1.msra.mxu0 %v109
  %891 = vmatprep.subr.mxu0 0.0
  %892 = vmatpush1.msra.mxu0 %v110
  %893 = vmatprep.subr.mxu0 0.0
  %894 = vmatpush1.msra.mxu0 %v111
  %895 = vmatprep.subr.mxu0 0.0
  %896 = vmatpush1.msra.mxu0 %v112
  %897 = vmatprep.subr.mxu0 0.0
  %898 = vmatpush1.msra.mxu0 %v113
  %899 = vmatprep.subr.mxu0 0.0
  %900 = vmatpush1.msra.mxu0 %v114
  %901 = vmatprep.mubr.f32.mxu0 %v560
  %902 = vmatmul.mubr.f32.gmra.mrb[0].mxu0 %v556
  %v903 = vpop.f32.mrb[0].mxu0
  %v904 = vadd.f32 %v834, %v903
  %v905 = vpop.f32.mrb[0].mxu0
  %906 = vdwg.mxu0
  %907 = vmatprep.subr.mxu0 0.0
  %908 = vmatpush1.msra.mxu0 %v115
  %909 = vmatprep.subr.mxu0 0.0
  %910 = vmatpush1.msra.mxu0 %v116
  %911 = vmatprep.subr.mxu0 0.0
  %912 = vmatpush1.msra.mxu0 %v117
  %913 = vmatprep.subr.mxu0 0.0
  %914 = vmatpush1.msra.mxu0 %v118
  %915 = vmatprep.subr.mxu0 0.0
  %916 = vmatpush1.msra.mxu0 %v119
  %917 = vmatprep.subr.mxu0 0.0
  %918 = vmatpush1.msra.mxu0 %v120
  %919 = vmatprep.subr.mxu0 0.0
  %920 = vmatpush1.msra.mxu0 %v121
  %921 = vmatprep.subr.mxu0 0.0
  %922 = vmatpush1.msra.mxu0 %v122
  %923 = vmatprep.subr.mxu0 0.0
  %924 = vmatpush1.msra.mxu0 %v123
  %925 = vmatprep.subr.mxu0 0.0
  %926 = vmatpush1.msra.mxu0 %v124
  %927 = vmatprep.subr.mxu0 0.0
  %928 = vmatpush1.msra.mxu0 %v125
  %929 = vmatprep.subr.mxu0 0.0
  %930 = vmatpush1.msra.mxu0 %v126
  %931 = vmatprep.subr.mxu0 0.0
  %932 = vmatpush1.msra.mxu0 %v127
  %933 = vmatprep.subr.mxu0 0.0
  %934 = vmatpush1.msra.mxu0 %v128
  %935 = vmatprep.subr.mxu0 0.0
  %936 = vmatpush1.msra.mxu0 %v129
  %937 = vmatprep.subr.mxu0 0.0
  %938 = vmatpush1.msra.mxu0 %v130
  %939 = vmatprep.subr.mxu0 0.0
  %940 = vmatpush1.msra.mxu0 %v131
  %941 = vmatprep.subr.mxu0 0.0
  %942 = vmatpush1.msra.mxu0 %v132
  %943 = vmatprep.subr.mxu0 0.0
  %944 = vmatpush1.msra.mxu0 %v133
  %945 = vmatprep.subr.mxu0 0.0
  %946 = vmatpush1.msra.mxu0 %v134
  %947 = vmatprep.subr.mxu0 0.0
  %948 = vmatpush1.msra.mxu0 %v135
  %949 = vmatprep.subr.mxu0 0.0
  %950 = vmatpush1.msra.mxu0 %v136
  %951 = vmatprep.subr.mxu0 0.0
  %952 = vmatpush1.msra.mxu0 %v137
  %953 = vmatprep.subr.mxu0 0.0
  %954 = vmatpush1.msra.mxu0 %v138
  %955 = vmatprep.subr.mxu0 0.0
  %956 = vmatpush1.msra.mxu0 %v139
  %957 = vmatprep.subr.mxu0 0.0
  %958 = vmatpush1.msra.mxu0 %v140
  %959 = vmatprep.subr.mxu0 0.0
  %960 = vmatpush1.msra.mxu0 %v141
  %961 = vmatprep.subr.mxu0 0.0
  %962 = vmatpush1.msra.mxu0 %v142
  %963 = vmatprep.subr.mxu0 0.0
  %964 = vmatpush1.msra.mxu0 %v143
  %965 = vmatprep.subr.mxu0 0.0
  %966 = vmatpush1.msra.mxu0 %v144
  %967 = vmatprep.subr.mxu0 0.0
  %968 = vmatpush1.msra.mxu0 %v145
  %969 = vmatprep.subr.mxu0 0.0
  %970 = vmatpush1.msra.mxu0 %v146
  %971 = vmatprep.mubr.f32.mxu0 %v568
  %972 = vmatmul.mubr.f32.gmra.mrb[0].mxu0 %v564
  %v973 = vpop.f32.mrb[0].mxu0
  %v974 = vadd.f32 %v904, %v973
  %v975 = vpop.f32.mrb[0].mxu0
  %976 = vdwg.mxu0
  %977 = vmatprep.subr.mxu0 0.0
  %978 = vmatpush1.msra.mxu0 %v147
  %979 = vmatprep.subr.mxu0 0.0
  %980 = vmatpush1.msra.mxu0 %v148
  %981 = vmatprep.subr.mxu0 0.0
  %982 = vmatpush1.msra.mxu0 %v149
  %983 = vmatprep.subr.mxu0 0.0
  %984 = vmatpush1.msra.mxu0 %v150
  %985 = vmatprep.subr.mxu0 0.0
  %986 = vmatpush1.msra.mxu0 %v151
  %987 = vmatprep.subr.mxu0 0.0
  %988 = vmatpush1.msra.mxu0 %v152
  %989 = vmatprep.subr.mxu0 0.0
  %990 = vmatpush1.msra.mxu0 %v153
  %991 = vmatprep.subr.mxu0 0.0
  %992 = vmatpush1.msra.mxu0 %v154
  %993 = vmatprep.subr.mxu0 0.0
  %994 = vmatpush1.msra.mxu0 %v155
  %995 = vmatprep.subr.mxu0 0.0
  %996 = vmatpush1.msra.mxu0 %v156
  %997 = vmatprep.subr.mxu0 0.0
  %998 = vmatpush1.msra.mxu0 %v157
  %999 = vmatprep.subr.mxu0 0.0
  %1000 = vmatpush1.msra.mxu0 %v158
  %1001 = vmatprep.subr.mxu0 0.0
  %1002 = vmatpush1.msra.mxu0 %v159
  %1003 = vmatprep.subr.mxu0 0.0
  %1004 = vmatpush1.msra.mxu0 %v160
  %1005 = vmatprep.subr.mxu0 0.0
  %1006 = vmatpush1.msra.mxu0 %v161
  %1007 = vmatprep.subr.mxu0 0.0
  %1008 = vmatpush1.msra.mxu0 %v162
  %1009 = vmatprep.subr.mxu0 0.0
  %1010 = vmatpush1.msra.mxu0 %v163
  %1011 = vmatprep.subr.mxu0 0.0
  %1012 = vmatpush1.msra.mxu0 %v164
  %1013 = vmatprep.subr.mxu0 0.0
  %1014 = vmatpush1.msra.mxu0 %v165
  %1015 = vmatprep.subr.mxu0 0.0
  %1016 = vmatpush1.msra.mxu0 %v166
  %1017 = vmatprep.subr.mxu0 0.0
  %1018 = vmatpush1.msra.mxu0 %v167
  %1019 = vmatprep.subr.mxu0 0.0
  %1020 = vmatpush1.msra.mxu0 %v168
  %1021 = vmatprep.subr.mxu0 0.0
  %1022 = vmatpush1.msra.mxu0 %v169
  %1023 = vmatprep.subr.mxu0 0.0
  %1024 = vmatpush1.msra.mxu0 %v170
  %1025 = vmatprep.subr.mxu0 0.0
  %1026 = vmatpush1.msra.mxu0 %v171
  %1027 = vmatprep.subr.mxu0 0.0
  %1028 = vmatpush1.msra.mxu0 %v172
  %1029 = vmatprep.subr.mxu0 0.0
  %1030 = vmatpush1.msra.mxu0 %v173
  %1031 = vmatprep.subr.mxu0 0.0
  %1032 = vmatpush1.msra.mxu0 %v174
  %1033 = vmatprep.subr.mxu0 0.0
  %1034 = vmatpush1.msra.mxu0 %v175
  %1035 = vmatprep.subr.mxu0 0.0
  %1036 = vmatpush1.msra.mxu0 %v176
  %1037 = vmatprep.subr.mxu0 0.0
  %1038 = vmatpush1.msra.mxu0 %v177
  %1039 = vmatprep.subr.mxu0 0.0
  %1040 = vmatpush1.msra.mxu0 %v178
  %1041 = vmatprep.mubr.f32.mxu0 %v576
  %1042 = vmatmul.mubr.f32.gmra.mrb[0].mxu0 %v572
  %v1043 = vpop.f32.mrb[0].mxu0
  %v1044 = vadd.f32 %v974, %v1043
  %v1045 = vpop.f32.mrb[0].mxu0
  %1046 = vdwg.mxu0
  %1047 = vmatprep.subr.mxu0 0.0
  %1048 = vmatpush1.msra.mxu0 %v179
  %1049 = vmatprep.subr.mxu0 0.0
  %1050 = vmatpush1.msra.mxu0 %v180
  %1051 = vmatprep.subr.mxu0 0.0
  %1052 = vmatpush1.msra.mxu0 %v181
  %1053 = vmatprep.subr.mxu0 0.0
  %1054 = vmatpush1.msra.mxu0 %v182
  %1055 = vmatprep.subr.mxu0 0.0
  %1056 = vmatpush1.msra.mxu0 %v183
  %1057 = vmatprep.subr.mxu0 0.0
  %1058 = vmatpush1.msra.mxu0 %v184
  %1059 = vmatprep.subr.mxu0 0.0
  %1060 = vmatpush1.msra.mxu0 %v185
  %1061 = vmatprep.subr.mxu0 0.0
  %1062 = vmatpush1.msra.mxu0 %v186
  %1063 = vmatprep.subr.mxu0 0.0
  %1064 = vmatpush1.msra.mxu0 %v187
  %1065 = vmatprep.subr.mxu0 0.0
  %1066 = vmatpush1.msra.mxu0 %v188
  %1067 = vmatprep.subr.mxu0 0.0
  %1068 = vmatpush1.msra.mxu0 %v189
  %1069 = vmatprep.subr.mxu0 0.0
  %1070 = vmatpush1.msra.mxu0 %v190
  %1071 = vmatprep.subr.mxu0 0.0
  %1072 = vmatpush1.msra.mxu0 %v191
  %1073 = vmatprep.subr.mxu0 0.0
  %1074 = vmatpush1.msra.mxu0 %v192
  %1075 = vmatprep.subr.mxu0 0.0
  %1076 = vmatpush1.msra.mxu0 %v193
  %1077 = vmatprep.subr.mxu0 0.0
  %1078 = vmatpush1.msra.mxu0 %v194
  %1079 = vmatprep.subr.mxu0 0.0
  %1080 = vmatpush1.msra.mxu0 %v195
  %1081 = vmatprep.subr.mxu0 0.0
  %1082 = vmatpush1.msra.mxu0 %v196
  %1083 = vmatprep.subr.mxu0 0.0
  %1084 = vmatpush1.msra.mxu0 %v197
  %1085 = vmatprep.subr.mxu0 0.0
  %1086 = vmatpush1.msra.mxu0 %v198
  %1087 = vmatprep.subr.mxu0 0.0
  %1088 = vmatpush1.msra.mxu0 %v199
  %1089 = vmatprep.subr.mxu0 0.0
  %1090 = vmatpush1.msra.mxu0 %v200
  %1091 = vmatprep.subr.mxu0 0.0
  %1092 = vmatpush1.msra.mxu0 %v201
  %1093 = vmatprep.subr.mxu0 0.0
  %1094 = vmatpush1.msra.mxu0 %v202
  %1095 = vmatprep.subr.mxu0 0.0
  %1096 = vmatpush1.msra.mxu0 %v203
  %1097 = vmatprep.subr.mxu0 0.0
  %1098 = vmatpush1.msra.mxu0 %v204
  %1099 = vmatprep.subr.mxu0 0.0
  %1100 = vmatpush1.msra.mxu0 %v205
  %1101 = vmatprep.subr.mxu0 0.0
  %1102 = vmatpush1.msra.mxu0 %v206
  %1103 = vmatprep.subr.mxu0 0.0
  %1104 = vmatpush1.msra.mxu0 %v207
  %1105 = vmatprep.subr.mxu0 0.0
  %1106 = vmatpush1.msra.mxu0 %v208
  %1107 = vmatprep.subr.mxu0 0.0
  %1108 = vmatpush1.msra.mxu0 %v209
  %1109 = vmatprep.subr.mxu0 0.0
  %1110 = vmatpush1.msra.mxu0 %v210
  %1111 = vmatprep.mubr.f32.mxu0 %v584
  %1112 = vmatmul.mubr.f32.gmra.mrb[0].mxu0 %v580
  %v1113 = vpop.f32.mrb[0].mxu0
  %v1114 = vadd.f32 %v1044, %v1113
  %v1115 = vpop.f32.mrb[0].mxu0
  %1116 = vdwg.mxu0
  %1117 = vmatprep.subr.mxu0 0.0
  %1118 = vmatpush1.msra.mxu0 %v211
  %1119 = vmatprep.subr.mxu0 0.0
  %1120 = vmatpush1.msra.mxu0 %v212
  %1121 = vmatprep.subr.mxu0 0.0
  %1122 = vmatpush1.msra.mxu0 %v213
  %1123 = vmatprep.subr.mxu0 0.0
  %1124 = vmatpush1.msra.mxu0 %v214
  %1125 = vmatprep.subr.mxu0 0.0
  %1126 = vmatpush1.msra.mxu0 %v215
  %1127 = vmatprep.subr.mxu0 0.0
  %1128 = vmatpush1.msra.mxu0 %v216
  %1129 = vmatprep.subr.mxu0 0.0
  %1130 = vmatpush1.msra.mxu0 %v217
  %1131 = vmatprep.subr.mxu0 0.0
  %1132 = vmatpush1.msra.mxu0 %v218
  %1133 = vmatprep.subr.mxu0 0.0
  %1134 = vmatpush1.msra.mxu0 %v219
  %1135 = vmatprep.subr.mxu0 0.0
  %1136 = vmatpush1.msra.mxu0 %v220
  %1137 = vmatprep.subr.mxu0 0.0
  %1138 = vmatpush1.msra.mxu0 %v221
  %1139 = vmatprep.subr.mxu0 0.0
  %1140 = vmatpush1.msra.mxu0 %v222
  %1141 = vmatprep.subr.mxu0 0.0
  %1142 = vmatpush1.msra.mxu0 %v223
  %1143 = vmatprep.subr.mxu0 0.0
  %1144 = vmatpush1.msra.mxu0 %v224
  %1145 = vmatprep.subr.mxu0 0.0
  %1146 = vmatpush1.msra.mxu0 %v225
  %1147 = vmatprep.subr.mxu0 0.0
  %1148 = vmatpush1.msra.mxu0 %v226
  %1149 = vmatprep.subr.mxu0 0.0
  %1150 = vmatpush1.msra.mxu0 %v227
  %1151 = vmatprep.subr.mxu0 0.0
  %1152 = vmatpush1.msra.mxu0 %v228
  %1153 = vmatprep.subr.mxu0 0.0
  %1154 = vmatpush1.msra.mxu0 %v229
  %1155 = vmatprep.subr.mxu0 0.0
  %1156 = vmatpush1.msra.mxu0 %v230
  %1157 = vmatprep.subr.mxu0 0.0
  %1158 = vmatpush1.msra.mxu0 %v231
  %1159 = vmatprep.subr.mxu0 0.0
  %1160 = vmatpush1.msra.mxu0 %v232
  %1161 = vmatprep.subr.mxu0 0.0
  %1162 = vmatpush1.msra.mxu0 %v233
  %1163 = vmatprep.subr.mxu0 0.0
  %1164 = vmatpush1.msra.mxu0 %v234
  %1165 = vmatprep.subr.mxu0 0.0
  %1166 = vmatpush1.msra.mxu0 %v235
  %1167 = vmatprep.subr.mxu0 0.0
  %1168 = vmatpush1.msra.mxu0 %v236
  %1169 = vmatprep.subr.mxu0 0.0
  %1170 = vmatpush1.msra.mxu0 %v237
  %1171 = vmatprep.subr.mxu0 0.0
  %1172 = vmatpush1.msra.mxu0 %v238
  %1173 = vmatprep.subr.mxu0 0.0
  %1174 = vmatpush1.msra.mxu0 %v239
  %1175 = vmatprep.subr.mxu0 0.0
  %1176 = vmatpush1.msra.mxu0 %v240
  %1177 = vmatprep.subr.mxu0 0.0
  %1178 = vmatpush1.msra.mxu0 %v241
  %1179 = vmatprep.subr.mxu0 0.0
  %1180 = vmatpush1.msra.mxu0 %v242
  %1181 = vmatprep.mubr.f32.mxu0 %v592
  %1182 = vmatmul.mubr.f32.gmra.mrb[0].mxu0 %v588
  %v1183 = vpop.f32.mrb[0].mxu0
  %v1184 = vadd.f32 %v1114, %v1183
  %v1185 = vpop.f32.mrb[0].mxu0
  %1186 = vdwg.mxu0
  %1187 = vmatprep.subr.mxu0 0.0
  %1188 = vmatpush1.msra.mxu0 %v243
  %1189 = vmatprep.subr.mxu0 0.0
  %1190 = vmatpush1.msra.mxu0 %v244
  %1191 = vmatprep.subr.mxu0 0.0
  %1192 = vmatpush1.msra.mxu0 %v245
  %1193 = vmatprep.subr.mxu0 0.0
  %1194 = vmatpush1.msra.mxu0 %v246
  %1195 = vmatprep.subr.mxu0 0.0
  %1196 = vmatpush1.msra.mxu0 %v247
  %1197 = vmatprep.subr.mxu0 0.0
  %1198 = vmatpush1.msra.mxu0 %v248
  %1199 = vmatprep.subr.mxu0 0.0
  %1200 = vmatpush1.msra.mxu0 %v249
  %1201 = vmatprep.subr.mxu0 0.0
  %1202 = vmatpush1.msra.mxu0 %v250
  %1203 = vmatprep.subr.mxu0 0.0
  %1204 = vmatpush1.msra.mxu0 %v251
  %1205 = vmatprep.subr.mxu0 0.0
  %1206 = vmatpush1.msra.mxu0 %v252
  %1207 = vmatprep.subr.mxu0 0.0
  %1208 = vmatpush1.msra.mxu0 %v253
  %1209 = vmatprep.subr.mxu0 0.0
  %1210 = vmatpush1.msra.mxu0 %v254
  %1211 = vmatprep.subr.mxu0 0.0
  %1212 = vmatpush1.msra.mxu0 %v255
  %1213 = vmatprep.subr.mxu0 0.0
  %1214 = vmatpush1.msra.mxu0 %v256
  %1215 = vmatprep.subr.mxu0 0.0
  %1216 = vmatpush1.msra.mxu0 %v257
  %1217 = vmatprep.subr.mxu0 0.0
  %1218 = vmatpush1.msra.mxu0 %v258
  %1219 = vmatprep.subr.mxu0 0.0
  %1220 = vmatpush1.msra.mxu0 %v259
  %1221 = vmatprep.subr.mxu0 0.0
  %1222 = vmatpush1.msra.mxu0 %v260
  %1223 = vmatprep.subr.mxu0 0.0
  %1224 = vmatpush1.msra.mxu0 %v261
  %1225 = vmatprep.subr.mxu0 0.0
  %1226 = vmatpush1.msra.mxu0 %v262
  %1227 = vmatprep.subr.mxu0 0.0
  %1228 = vmatpush1.msra.mxu0 %v263
  %1229 = vmatprep.subr.mxu0 0.0
  %1230 = vmatpush1.msra.mxu0 %v264
  %1231 = vmatprep.subr.mxu0 0.0
  %1232 = vmatpush1.msra.mxu0 %v265
  %1233 = vmatprep.subr.mxu0 0.0
  %1234 = vmatpush1.msra.mxu0 %v266
  %1235 = vmatprep.subr.mxu0 0.0
  %1236 = vmatpush1.msra.mxu0 %v267
  %1237 = vmatprep.subr.mxu0 0.0
  %1238 = vmatpush1.msra.mxu0 %v268
  %1239 = vmatprep.subr.mxu0 0.0
  %1240 = vmatpush1.msra.mxu0 %v269
  %1241 = vmatprep.subr.mxu0 0.0
  %1242 = vmatpush1.msra.mxu0 %v270
  %1243 = vmatprep.subr.mxu0 0.0
  %1244 = vmatpush1.msra.mxu0 %v271
  %1245 = vmatprep.subr.mxu0 0.0
  %1246 = vmatpush1.msra.mxu0 %v272
  %1247 = vmatprep.subr.mxu0 0.0
  %1248 = vmatpush1.msra.mxu0 %v273
  %1249 = vmatprep.subr.mxu0 0.0
  %1250 = vmatpush1.msra.mxu0 %v274
  %1251 = vmatprep.mubr.f32.mxu0 %v600
  %1252 = vmatmul.mubr.f32.gmra.mrb[0].mxu0 %v596
  %v1253 = vpop.f32.mrb[0].mxu0
  %v1254 = vadd.f32 %v1184, %v1253
  %v1255 = vpop.f32.mrb[0].mxu0
  %1256 = vdwg.mxu0
  %1257 = vmatprep.subr.mxu0 0.0
  %1258 = vmatpush1.msra.mxu0 %v275
  %1259 = vmatprep.subr.mxu0 0.0
  %1260 = vmatpush1.msra.mxu0 %v276
  %1261 = vmatprep.subr.mxu0 0.0
  %1262 = vmatpush1.msra.mxu0 %v277
  %1263 = vmatprep.subr.mxu0 0.0
  %1264 = vmatpush1.msra.mxu0 %v278
  %1265 = vmatprep.subr.mxu0 0.0
  %1266 = vmatpush1.msra.mxu0 %v279
  %1267 = vmatprep.subr.mxu0 0.0
  %1268 = vmatpush1.msra.mxu0 %v280
  %1269 = vmatprep.subr.mxu0 0.0
  %1270 = vmatpush1.msra.mxu0 %v281
  %1271 = vmatprep.subr.mxu0 0.0
  %1272 = vmatpush1.msra.mxu0 %v282
  %1273 = vmatprep.subr.mxu0 0.0
  %1274 = vmatpush1.msra.mxu0 %v283
  %1275 = vmatprep.subr.mxu0 0.0
  %1276 = vmatpush1.msra.mxu0 %v284
  %1277 = vmatprep.subr.mxu0 0.0
  %1278 = vmatpush1.msra.mxu0 %v285
  %1279 = vmatprep.subr.mxu0 0.0
  %1280 = vmatpush1.msra.mxu0 %v286
  %1281 = vmatprep.subr.mxu0 0.0
  %1282 = vmatpush1.msra.mxu0 %v287
  %1283 = vmatprep.subr.mxu0 0.0
  %1284 = vmatpush1.msra.mxu0 %v288
  %1285 = vmatprep.subr.mxu0 0.0
  %1286 = vmatpush1.msra.mxu0 %v289
  %1287 = vmatprep.subr.mxu0 0.0
  %1288 = vmatpush1.msra.mxu0 %v290
  %1289 = vmatprep.subr.mxu0 0.0
  %1290 = vmatpush1.msra.mxu0 %v291
  %1291 = vmatprep.subr.mxu0 0.0
  %1292 = vmatpush1.msra.mxu0 %v292
  %1293 = vmatprep.subr.mxu0 0.0
  %1294 = vmatpush1.msra.mxu0 %v293
  %1295 = vmatprep.subr.mxu0 0.0
  %1296 = vmatpush1.msra.mxu0 %v294
  %1297 = vmatprep.subr.mxu0 0.0
  %1298 = vmatpush1.msra.mxu0 %v295
  %1299 = vmatprep.subr.mxu0 0.0
  %1300 = vmatpush1.msra.mxu0 %v296
  %1301 = vmatprep.subr.mxu0 0.0
  %1302 = vmatpush1.msra.mxu0 %v297
  %1303 = vmatprep.subr.mxu0 0.0
  %1304 = vmatpush1.msra.mxu0 %v298
  %1305 = vmatprep.subr.mxu0 0.0
  %1306 = vmatpush1.msra.mxu0 %v299
  %1307 = vmatprep.subr.mxu0 0.0
  %1308 = vmatpush1.msra.mxu0 %v300
  %1309 = vmatprep.subr.mxu0 0.0
  %1310 = vmatpush1.msra.mxu0 %v301
  %1311 = vmatprep.subr.mxu0 0.0
  %1312 = vmatpush1.msra.mxu0 %v302
  %1313 = vmatprep.subr.mxu0 0.0
  %1314 = vmatpush1.msra.mxu0 %v303
  %1315 = vmatprep.subr.mxu0 0.0
  %1316 = vmatpush1.msra.mxu0 %v304
  %1317 = vmatprep.subr.mxu0 0.0
  %1318 = vmatpush1.msra.mxu0 %v305
  %1319 = vmatprep.subr.mxu0 0.0
  %1320 = vmatpush1.msra.mxu0 %v306
  %1321 = vmatprep.mubr.f32.mxu0 %v608
  %1322 = vmatmul.mubr.f32.gmra.mrb[0].mxu0 %v604
  %v1323 = vpop.f32.mrb[0].mxu0
  %v1324 = vadd.f32 %v1254, %v1323
  %v1325 = vpop.f32.mrb[0].mxu0
  %1326 = vdwg.mxu0
  %1327 = vmatprep.subr.mxu0 0.0
  %1328 = vmatpush1.msra.mxu0 %v307
  %1329 = vmatprep.subr.mxu0 0.0
  %1330 = vmatpush1.msra.mxu0 %v308
  %1331 = vmatprep.subr.mxu0 0.0
  %1332 = vmatpush1.msra.mxu0 %v309
  %1333 = vmatprep.subr.mxu0 0.0
  %1334 = vmatpush1.msra.mxu0 %v310
  %1335 = vmatprep.subr.mxu0 0.0
  %1336 = vmatpush1.msra.mxu0 %v311
  %1337 = vmatprep.subr.mxu0 0.0
  %1338 = vmatpush1.msra.mxu0 %v312
  %1339 = vmatprep.subr.mxu0 0.0
  %1340 = vmatpush1.msra.mxu0 %v313
  %1341 = vmatprep.subr.mxu0 0.0
  %1342 = vmatpush1.msra.mxu0 %v314
  %1343 = vmatprep.subr.mxu0 0.0
  %1344 = vmatpush1.msra.mxu0 %v315
  %1345 = vmatprep.subr.mxu0 0.0
  %1346 = vmatpush1.msra.mxu0 %v316
  %1347 = vmatprep.subr.mxu0 0.0
  %1348 = vmatpush1.msra.mxu0 %v317
  %1349 = vmatprep.subr.mxu0 0.0
  %1350 = vmatpush1.msra.mxu0 %v318
  %1351 = vmatprep.subr.mxu0 0.0
  %1352 = vmatpush1.msra.mxu0 %v319
  %1353 = vmatprep.subr.mxu0 0.0
  %1354 = vmatpush1.msra.mxu0 %v320
  %1355 = vmatprep.subr.mxu0 0.0
  %1356 = vmatpush1.msra.mxu0 %v321
  %1357 = vmatprep.subr.mxu0 0.0
  %1358 = vmatpush1.msra.mxu0 %v322
  %1359 = vmatprep.subr.mxu0 0.0
  %1360 = vmatpush1.msra.mxu0 %v323
  %1361 = vmatprep.subr.mxu0 0.0
  %1362 = vmatpush1.msra.mxu0 %v324
  %1363 = vmatprep.subr.mxu0 0.0
  %1364 = vmatpush1.msra.mxu0 %v325
  %1365 = vmatprep.subr.mxu0 0.0
  %1366 = vmatpush1.msra.mxu0 %v326
  %1367 = vmatprep.subr.mxu0 0.0
  %1368 = vmatpush1.msra.mxu0 %v327
  %1369 = vmatprep.subr.mxu0 0.0
  %1370 = vmatpush1.msra.mxu0 %v328
  %1371 = vmatprep.subr.mxu0 0.0
  %1372 = vmatpush1.msra.mxu0 %v329
  %1373 = vmatprep.subr.mxu0 0.0
  %1374 = vmatpush1.msra.mxu0 %v330
  %1375 = vmatprep.subr.mxu0 0.0
  %1376 = vmatpush1.msra.mxu0 %v331
  %1377 = vmatprep.subr.mxu0 0.0
  %1378 = vmatpush1.msra.mxu0 %v332
  %1379 = vmatprep.subr.mxu0 0.0
  %1380 = vmatpush1.msra.mxu0 %v333
  %1381 = vmatprep.subr.mxu0 0.0
  %1382 = vmatpush1.msra.mxu0 %v334
  %1383 = vmatprep.subr.mxu0 0.0
  %1384 = vmatpush1.msra.mxu0 %v335
  %1385 = vmatprep.subr.mxu0 0.0
  %1386 = vmatpush1.msra.mxu0 %v336
  %1387 = vmatprep.subr.mxu0 0.0
  %1388 = vmatpush1.msra.mxu0 %v337
  %1389 = vmatprep.subr.mxu0 0.0
  %1390 = vmatpush1.msra.mxu0 %v338
  %1391 = vmatprep.mubr.f32.mxu0 %v616
  %1392 = vmatmul.mubr.f32.gmra.mrb[0].mxu0 %v612
  %v1393 = vpop.f32.mrb[0].mxu0
  %v1394 = vadd.f32 %v1324, %v1393
  %v1395 = vpop.f32.mrb[0].mxu0
  %1396 = vdwg.mxu0
  %1397 = vmatprep.subr.mxu0 0.0
  %1398 = vmatpush1.msra.mxu0 %v339
  %1399 = vmatprep.subr.mxu0 0.0
  %1400 = vmatpush1.msra.mxu0 %v340
  %1401 = vmatprep.subr.mxu0 0.0
  %1402 = vmatpush1.msra.mxu0 %v341
  %1403 = vmatprep.subr.mxu0 0.0
  %1404 = vmatpush1.msra.mxu0 %v342
  %1405 = vmatprep.subr.mxu0 0.0
  %1406 = vmatpush1.msra.mxu0 %v343
  %1407 = vmatprep.subr.mxu0 0.0
  %1408 = vmatpush1.msra.mxu0 %v344
  %1409 = vmatprep.subr.mxu0 0.0
  %1410 = vmatpush1.msra.mxu0 %v345
  %1411 = vmatprep.subr.mxu0 0.0
  %1412 = vmatpush1.msra.mxu0 %v346
  %1413 = vmatprep.subr.mxu0 0.0
  %1414 = vmatpush1.msra.mxu0 %v347
  %1415 = vmatprep.subr.mxu0 0.0
  %1416 = vmatpush1.msra.mxu0 %v348
  %1417 = vmatprep.subr.mxu0 0.0
  %1418 = vmatpush1.msra.mxu0 %v349
  %1419 = vmatprep.subr.mxu0 0.0
  %1420 = vmatpush1.msra.mxu0 %v350
  %1421 = vmatprep.subr.mxu0 0.0
  %1422 = vmatpush1.msra.mxu0 %v351
  %1423 = vmatprep.subr.mxu0 0.0
  %1424 = vmatpush1.msra.mxu0 %v352
  %1425 = vmatprep.subr.mxu0 0.0
  %1426 = vmatpush1.msra.mxu0 %v353
  %1427 = vmatprep.subr.mxu0 0.0
  %1428 = vmatpush1.msra.mxu0 %v354
  %1429 = vmatprep.subr.mxu0 0.0
  %1430 = vmatpush1.msra.mxu0 %v355
  %1431 = vmatprep.subr.mxu0 0.0
  %1432 = vmatpush1.msra.mxu0 %v356
  %1433 = vmatprep.subr.mxu0 0.0
  %1434 = vmatpush1.msra.mxu0 %v357
  %1435 = vmatprep.subr.mxu0 0.0
  %1436 = vmatpush1.msra.mxu0 %v358
  %1437 = vmatprep.subr.mxu0 0.0
  %1438 = vmatpush1.msra.mxu0 %v359
  %1439 = vmatprep.subr.mxu0 0.0
  %1440 = vmatpush1.msra.mxu0 %v360
  %1441 = vmatprep.subr.mxu0 0.0
  %1442 = vmatpush1.msra.mxu0 %v361
  %1443 = vmatprep.subr.mxu0 0.0
  %1444 = vmatpush1.msra.mxu0 %v362
  %1445 = vmatprep.subr.mxu0 0.0
  %1446 = vmatpush1.msra.mxu0 %v363
  %1447 = vmatprep.subr.mxu0 0.0
  %1448 = vmatpush1.msra.mxu0 %v364
  %1449 = vmatprep.subr.mxu0 0.0
  %1450 = vmatpush1.msra.mxu0 %v365
  %1451 = vmatprep.subr.mxu0 0.0
  %1452 = vmatpush1.msra.mxu0 %v366
  %1453 = vmatprep.subr.mxu0 0.0
  %1454 = vmatpush1.msra.mxu0 %v367
  %1455 = vmatprep.subr.mxu0 0.0
  %1456 = vmatpush1.msra.mxu0 %v368
  %1457 = vmatprep.subr.mxu0 0.0
  %1458 = vmatpush1.msra.mxu0 %v369
  %1459 = vmatprep.subr.mxu0 0.0
  %1460 = vmatpush1.msra.mxu0 %v370
  %1461 = vmatprep.mubr.f32.mxu0 %v624
  %1462 = vmatmul.mubr.f32.gmra.mrb[0].mxu0 %v620
  %v1463 = vpop.f32.mrb[0].mxu0
  %v1464 = vadd.f32 %v1394, %v1463
  %v1465 = vpop.f32.mrb[0].mxu0
  %1466 = vdwg.mxu0
  %1467 = vmatprep.subr.mxu0 0.0
  %1468 = vmatpush1.msra.mxu0 %v371
  %1469 = vmatprep.subr.mxu0 0.0
  %1470 = vmatpush1.msra.mxu0 %v372
  %1471 = vmatprep.subr.mxu0 0.0
  %1472 = vmatpush1.msra.mxu0 %v373
  %1473 = vmatprep.subr.mxu0 0.0
  %1474 = vmatpush1.msra.mxu0 %v374
  %1475 = vmatprep.subr.mxu0 0.0
  %1476 = vmatpush1.msra.mxu0 %v375
  %1477 = vmatprep.subr.mxu0 0.0
  %1478 = vmatpush1.msra.mxu0 %v376
  %1479 = vmatprep.subr.mxu0 0.0
  %1480 = vmatpush1.msra.mxu0 %v377
  %1481 = vmatprep.subr.mxu0 0.0
  %1482 = vmatpush1.msra.mxu0 %v378
  %1483 = vmatprep.subr.mxu0 0.0
  %1484 = vmatpush1.msra.mxu0 %v379
  %1485 = vmatprep.subr.mxu0 0.0
  %1486 = vmatpush1.msra.mxu0 %v380
  %1487 = vmatprep.subr.mxu0 0.0
  %1488 = vmatpush1.msra.mxu0 %v381
  %1489 = vmatprep.subr.mxu0 0.0
  %1490 = vmatpush1.msra.mxu0 %v382
  %1491 = vmatprep.subr.mxu0 0.0
  %1492 = vmatpush1.msra.mxu0 %v383
  %1493 = vmatprep.subr.mxu0 0.0
  %1494 = vmatpush1.msra.mxu0 %v384
  %1495 = vmatprep.subr.mxu0 0.0
  %1496 = vmatpush1.msra.mxu0 %v385
  %1497 = vmatprep.subr.mxu0 0.0
  %1498 = vmatpush1.msra.mxu0 %v386
  %1499 = vmatprep.subr.mxu0 0.0
  %1500 = vmatpush1.msra.mxu0 %v387
  %1501 = vmatprep.subr.mxu0 0.0
  %1502 = vmatpush1.msra.mxu0 %v388
  %1503 = vmatprep.subr.mxu0 0.0
  %1504 = vmatpush1.msra.mxu0 %v389
  %1505 = vmatprep.subr.mxu0 0.0
  %1506 = vmatpush1.msra.mxu0 %v390
  %1507 = vmatprep.subr.mxu0 0.0
  %1508 = vmatpush1.msra.mxu0 %v391
  %1509 = vmatprep.subr.mxu0 0.0
  %1510 = vmatpush1.msra.mxu0 %v392
  %1511 = vmatprep.subr.mxu0 0.0
  %1512 = vmatpush1.msra.mxu0 %v393
  %1513 = vmatprep.subr.mxu0 0.0
  %1514 = vmatpush1.msra.mxu0 %v394
  %1515 = vmatprep.subr.mxu0 0.0
  %1516 = vmatpush1.msra.mxu0 %v395
  %1517 = vmatprep.subr.mxu0 0.0
  %1518 = vmatpush1.msra.mxu0 %v396
  %1519 = vmatprep.subr.mxu0 0.0
  %1520 = vmatpush1.msra.mxu0 %v397
  %1521 = vmatprep.subr.mxu0 0.0
  %1522 = vmatpush1.msra.mxu0 %v398
  %1523 = vmatprep.subr.mxu0 0.0
  %1524 = vmatpush1.msra.mxu0 %v399
  %1525 = vmatprep.subr.mxu0 0.0
  %1526 = vmatpush1.msra.mxu0 %v400
  %1527 = vmatprep.subr.mxu0 0.0
  %1528 = vmatpush1.msra.mxu0 %v401
  %1529 = vmatprep.subr.mxu0 0.0
  %1530 = vmatpush1.msra.mxu0 %v402
  %1531 = vmatprep.mubr.f32.mxu0 %v632
  %1532 = vmatmul.mubr.f32.gmra.mrb[0].mxu0 %v628
  %v1533 = vpop.f32.mrb[0].mxu0
  %v1534 = vadd.f32 %v1464, %v1533
  %v1535 = vpop.f32.mrb[0].mxu0
  %1536 = vdwg.mxu0
  %1537 = vmatprep.subr.mxu0 0.0
  %1538 = vmatpush1.msra.mxu0 %v403
  %1539 = vmatprep.subr.mxu0 0.0
  %1540 = vmatpush1.msra.mxu0 %v404
  %1541 = vmatprep.subr.mxu0 0.0
  %1542 = vmatpush1.msra.mxu0 %v405
  %1543 = vmatprep.subr.mxu0 0.0
  %1544 = vmatpush1.msra.mxu0 %v406
  %1545 = vmatprep.subr.mxu0 0.0
  %1546 = vmatpush1.msra.mxu0 %v407
  %1547 = vmatprep.subr.mxu0 0.0
  %1548 = vmatpush1.msra.mxu0 %v408
  %1549 = vmatprep.subr.mxu0 0.0
  %1550 = vmatpush1.msra.mxu0 %v409
  %1551 = vmatprep.subr.mxu0 0.0
  %1552 = vmatpush1.msra.mxu0 %v410
  %1553 = vmatprep.subr.mxu0 0.0
  %1554 = vmatpush1.msra.mxu0 %v411
  %1555 = vmatprep.subr.mxu0 0.0
  %1556 = vmatpush1.msra.mxu0 %v412
  %1557 = vmatprep.subr.mxu0 0.0
  %1558 = vmatpush1.msra.mxu0 %v413
  %1559 = vmatprep.subr.mxu0 0.0
  %1560 = vmatpush1.msra.mxu0 %v414
  %1561 = vmatprep.subr.mxu0 0.0
  %1562 = vmatpush1.msra.mxu0 %v415
  %1563 = vmatprep.subr.mxu0 0.0
  %1564 = vmatpush1.msra.mxu0 %v416
  %1565 = vmatprep.subr.mxu0 0.0
  %1566 = vmatpush1.msra.mxu0 %v417
  %1567 = vmatprep.subr.mxu0 0.0
  %1568 = vmatpush1.msra.mxu0 %v418
  %1569 = vmatprep.subr.mxu0 0.0
  %1570 = vmatpush1.msra.mxu0 %v419
  %1571 = vmatprep.subr.mxu0 0.0
  %1572 = vmatpush1.msra.mxu0 %v420
  %1573 = vmatprep.subr.mxu0 0.0
  %1574 = vmatpush1.msra.mxu0 %v421
  %1575 = vmatprep.subr.mxu0 0.0
  %1576 = vmatpush1.msra.mxu0 %v422
  %1577 = vmatprep.subr.mxu0 0.0
  %1578 = vmatpush1.msra.mxu0 %v423
  %1579 = vmatprep.subr.mxu0 0.0
  %1580 = vmatpush1.msra.mxu0 %v424
  %1581 = vmatprep.subr.mxu0 0.0
  %1582 = vmatpush1.msra.mxu0 %v425
  %1583 = vmatprep.subr.mxu0 0.0
  %1584 = vmatpush1.msra.mxu0 %v426
  %1585 = vmatprep.subr.mxu0 0.0
  %1586 = vmatpush1.msra.mxu0 %v427
  %1587 = vmatprep.subr.mxu0 0.0
  %1588 = vmatpush1.msra.mxu0 %v428
  %1589 = vmatprep.subr.mxu0 0.0
  %1590 = vmatpush1.msra.mxu0 %v429
  %1591 = vmatprep.subr.mxu0 0.0
  %1592 = vmatpush1.msra.mxu0 %v430
  %1593 = vmatprep.subr.mxu0 0.0
  %1594 = vmatpush1.msra.mxu0 %v431
  %1595 = vmatprep.subr.mxu0 0.0
  %1596 = vmatpush1.msra.mxu0 %v432
  %1597 = vmatprep.subr.mxu0 0.0
  %1598 = vmatpush1.msra.mxu0 %v433
  %1599 = vmatprep.subr.mxu0 0.0
  %1600 = vmatpush1.msra.mxu0 %v434
  %1601 = vmatprep.mubr.f32.mxu0 %v640
  %1602 = vmatmul.mubr.f32.gmra.mrb[0].mxu0 %v636
  %v1603 = vpop.f32.mrb[0].mxu0
  %v1604 = vadd.f32 %v1534, %v1603
  %v1605 = vpop.f32.mrb[0].mxu0
  %1606 = vdwg.mxu0
  %1607 = vmatprep.subr.mxu0 0.0
  %1608 = vmatpush1.msra.mxu0 %v435
  %1609 = vmatprep.subr.mxu0 0.0
  %1610 = vmatpush1.msra.mxu0 %v436
  %1611 = vmatprep.subr.mxu0 0.0
  %1612 = vmatpush1.msra.mxu0 %v437
  %1613 = vmatprep.subr.mxu0 0.0
  %1614 = vmatpush1.msra.mxu0 %v438
  %1615 = vmatprep.subr.mxu0 0.0
  %1616 = vmatpush1.msra.mxu0 %v439
  %1617 = vmatprep.subr.mxu0 0.0
  %1618 = vmatpush1.msra.mxu0 %v440
  %1619 = vmatprep.subr.mxu0 0.0
  %1620 = vmatpush1.msra.mxu0 %v441
  %1621 = vmatprep.subr.mxu0 0.0
  %1622 = vmatpush1.msra.mxu0 %v442
  %1623 = vmatprep.subr.mxu0 0.0
  %1624 = vmatpush1.msra.mxu0 %v443
  %1625 = vmatprep.subr.mxu0 0.0
  %1626 = vmatpush1.msra.mxu0 %v444
  %1627 = vmatprep.subr.mxu0 0.0
  %1628 = vmatpush1.msra.mxu0 %v445
  %1629 = vmatprep.subr.mxu0 0.0
  %1630 = vmatpush1.msra.mxu0 %v446
  %1631 = vmatprep.subr.mxu0 0.0
  %1632 = vmatpush1.msra.mxu0 %v447
  %1633 = vmatprep.subr.mxu0 0.0
  %1634 = vmatpush1.msra.mxu0 %v448
  %1635 = vmatprep.subr.mxu0 0.0
  %1636 = vmatpush1.msra.mxu0 %v449
  %1637 = vmatprep.subr.mxu0 0.0
  %1638 = vmatpush1.msra.mxu0 %v450
  %1639 = vmatprep.subr.mxu0 0.0
  %1640 = vmatpush1.msra.mxu0 %v451
  %1641 = vmatprep.subr.mxu0 0.0
  %1642 = vmatpush1.msra.mxu0 %v452
  %1643 = vmatprep.subr.mxu0 0.0
  %1644 = vmatpush1.msra.mxu0 %v453
  %1645 = vmatprep.subr.mxu0 0.0
  %1646 = vmatpush1.msra.mxu0 %v454
  %1647 = vmatprep.subr.mxu0 0.0
  %1648 = vmatpush1.msra.mxu0 %v455
  %1649 = vmatprep.subr.mxu0 0.0
  %1650 = vmatpush1.msra.mxu0 %v456
  %1651 = vmatprep.subr.mxu0 0.0
  %1652 = vmatpush1.msra.mxu0 %v457
  %1653 = vmatprep.subr.mxu0 0.0
  %1654 = vmatpush1.msra.mxu0 %v458
  %1655 = vmatprep.subr.mxu0 0.0
  %1656 = vmatpush1.msra.mxu0 %v459
  %1657 = vmatprep.subr.mxu0 0.0
  %1658 = vmatpush1.msra.mxu0 %v460
  %1659 = vmatprep.subr.mxu0 0.0
  %1660 = vmatpush1.msra.mxu0 %v461
  %1661 = vmatprep.subr.mxu0 0.0
  %1662 = vmatpush1.msra.mxu0 %v462
  %1663 = vmatprep.subr.mxu0 0.0
  %1664 = vmatpush1.msra.mxu0 %v463
  %1665 = vmatprep.subr.mxu0 0.0
  %1666 = vmatpush1.msra.mxu0 %v464
  %1667 = vmatprep.subr.mxu0 0.0
  %1668 = vmatpush1.msra.mxu0 %v465
  %1669 = vmatprep.subr.mxu0 0.0
  %1670 = vmatpush1.msra.mxu0 %v466
  %1671 = vmatprep.mubr.f32.mxu0 %v648
  %1672 = vmatmul.mubr.f32.gmra.mrb[0].mxu0 %v644
  %v1673 = vpop.f32.mrb[0].mxu0
  %v1674 = vadd.f32 %v1604, %v1673
  %v1675 = vpop.f32.mrb[0].mxu0
  %1676 = vdwg.mxu0
  %1677 = vmatprep.subr.mxu0 0.0
  %1678 = vmatpush1.msra.mxu0 %v467
  %1679 = vmatprep.subr.mxu0 0.0
  %1680 = vmatpush1.msra.mxu0 %v468
  %1681 = vmatprep.subr.mxu0 0.0
  %1682 = vmatpush1.msra.mxu0 %v469
  %1683 = vmatprep.subr.mxu0 0.0
  %1684 = vmatpush1.msra.mxu0 %v470
  %1685 = vmatprep.subr.mxu0 0.0
  %1686 = vmatpush1.msra.mxu0 %v471
  %1687 = vmatprep.subr.mxu0 0.0
  %1688 = vmatpush1.msra.mxu0 %v472
  %1689 = vmatprep.subr.mxu0 0.0
  %1690 = vmatpush1.msra.mxu0 %v473
  %1691 = vmatprep.subr.mxu0 0.0
  %1692 = vmatpush1.msra.mxu0 %v474
  %1693 = vmatprep.subr.mxu0 0.0
  %1694 = vmatpush1.msra.mxu0 %v475
  %1695 = vmatprep.subr.mxu0 0.0
  %1696 = vmatpush1.msra.mxu0 %v476
  %1697 = vmatprep.subr.mxu0 0.0
  %1698 = vmatpush1.msra.mxu0 %v477
  %1699 = vmatprep.subr.mxu0 0.0
  %1700 = vmatpush1.msra.mxu0 %v478
  %1701 = vmatprep.subr.mxu0 0.0
  %1702 = vmatpush1.msra.mxu0 %v479
  %1703 = vmatprep.subr.mxu0 0.0
  %1704 = vmatpush1.msra.mxu0 %v480
  %1705 = vmatprep.subr.mxu0 0.0
  %1706 = vmatpush1.msra.mxu0 %v481
  %1707 = vmatprep.subr.mxu0 0.0
  %1708 = vmatpush1.msra.mxu0 %v482
  %1709 = vmatprep.subr.mxu0 0.0
  %1710 = vmatpush1.msra.mxu0 %v483
  %1711 = vmatprep.subr.mxu0 0.0
  %1712 = vmatpush1.msra.mxu0 %v484
  %1713 = vmatprep.subr.mxu0 0.0
  %1714 = vmatpush1.msra.mxu0 %v485
  %1715 = vmatprep.subr.mxu0 0.0
  %1716 = vmatpush1.msra.mxu0 %v486
  %1717 = vmatprep.subr.mxu0 0.0
  %1718 = vmatpush1.msra.mxu0 %v487
  %1719 = vmatprep.subr.mxu0 0.0
  %1720 = vmatpush1.msra.mxu0 %v488
  %1721 = vmatprep.subr.mxu0 0.0
  %1722 = vmatpush1.msra.mxu0 %v489
  %1723 = vmatprep.subr.mxu0 0.0
  %1724 = vmatpush1.msra.mxu0 %v490
  %1725 = vmatprep.subr.mxu0 0.0
  %1726 = vmatpush1.msra.mxu0 %v491
  %1727 = vmatprep.subr.mxu0 0.0
  %1728 = vmatpush1.msra.mxu0 %v492
  %1729 = vmatprep.subr.mxu0 0.0
  %1730 = vmatpush1.msra.mxu0 %v493
  %1731 = vmatprep.subr.mxu0 0.0
  %1732 = vmatpush1.msra.mxu0 %v494
  %1733 = vmatprep.subr.mxu0 0.0
  %1734 = vmatpush1.msra.mxu0 %v495
  %1735 = vmatprep.subr.mxu0 0.0
  %1736 = vmatpush1.msra.mxu0 %v496
  %1737 = vmatprep.subr.mxu0 0.0
  %1738 = vmatpush1.msra.mxu0 %v497
  %1739 = vmatprep.subr.mxu0 0.0
  %1740 = vmatpush1.msra.mxu0 %v498
  %1741 = vmatprep.mubr.f32.mxu0 %v656
  %1742 = vmatmul.mubr.f32.gmra.mrb[0].mxu0 %v652
  %v1743 = vpop.f32.mrb[0].mxu0
  %v1744 = vadd.f32 %v1674, %v1743
  %v1745 = vpop.f32.mrb[0].mxu0
  %1746 = vdwg.mxu0
  %1747 = vmatprep.subr.mxu0 0.0
  %1748 = vmatpush1.msra.mxu0 %v499
  %1749 = vmatprep.subr.mxu0 0.0
  %1750 = vmatpush1.msra.mxu0 %v500
  %1751 = vmatprep.subr.mxu0 0.0
  %1752 = vmatpush1.msra.mxu0 %v501
  %1753 = vmatprep.subr.mxu0 0.0
  %1754 = vmatpush1.msra.mxu0 %v502
  %1755 = vmatprep.subr.mxu0 0.0
  %1756 = vmatpush1.msra.mxu0 %v503
  %1757 = vmatprep.subr.mxu0 0.0
  %1758 = vmatpush1.msra.mxu0 %v504
  %1759 = vmatprep.subr.mxu0 0.0
  %1760 = vmatpush1.msra.mxu0 %v505
  %1761 = vmatprep.subr.mxu0 0.0
  %1762 = vmatpush1.msra.mxu0 %v506
  %1763 = vmatprep.subr.mxu0 0.0
  %1764 = vmatpush1.msra.mxu0 %v507
  %1765 = vmatprep.subr.mxu0 0.0
  %1766 = vmatpush1.msra.mxu0 %v508
  %1767 = vmatprep.subr.mxu0 0.0
  %1768 = vmatpush1.msra.mxu0 %v509
  %1769 = vmatprep.subr.mxu0 0.0
  %1770 = vmatpush1.msra.mxu0 %v510
  %1771 = vmatprep.subr.mxu0 0.0
  %1772 = vmatpush1.msra.mxu0 %v511
  %1773 = vmatprep.subr.mxu0 0.0
  %1774 = vmatpush1.msra.mxu0 %v512
  %1775 = vmatprep.subr.mxu0 0.0
  %1776 = vmatpush1.msra.mxu0 %v513
  %1777 = vmatprep.subr.mxu0 0.0
  %1778 = vmatpush1.msra.mxu0 %v514
  %1779 = vmatprep.subr.mxu0 0.0
  %1780 = vmatpush1.msra.mxu0 %v515
  %1781 = vmatprep.subr.mxu0 0.0
  %1782 = vmatpush1.msra.mxu0 %v516
  %1783 = vmatprep.subr.mxu0 0.0
  %1784 = vmatpush1.msra.mxu0 %v517
  %1785 = vmatprep.subr.mxu0 0.0
  %1786 = vmatpush1.msra.mxu0 %v518
  %1787 = vmatprep.subr.mxu0 0.0
  %1788 = vmatpush1.msra.mxu0 %v519
  %1789 = vmatprep.subr.mxu0 0.0
  %1790 = vmatpush1.msra.mxu0 %v520
  %1791 = vmatprep.subr.mxu0 0.0
  %1792 = vmatpush1.msra.mxu0 %v521
  %1793 = vmatprep.subr.mxu0 0.0
  %1794 = vmatpush1.msra.mxu0 %v522
  %1795 = vmatprep.subr.mxu0 0.0
  %1796 = vmatpush1.msra.mxu0 %v523
  %1797 = vmatprep.subr.mxu0 0.0
  %1798 = vmatpush1.msra.mxu0 %v524
  %1799 = vmatprep.subr.mxu0 0.0
  %1800 = vmatpush1.msra.mxu0 %v525
  %1801 = vmatprep.subr.mxu0 0.0
  %1802 = vmatpush1.msra.mxu0 %v526
  %1803 = vmatprep.subr.mxu0 0.0
  %1804 = vmatpush1.msra.mxu0 %v527
  %1805 = vmatprep.subr.mxu0 0.0
  %1806 = vmatpush1.msra.mxu0 %v528
  %1807 = vmatprep.subr.mxu0 0.0
  %1808 = vmatpush1.msra.mxu0 %v529
  %1809 = vmatprep.subr.mxu0 0.0
  %1810 = vmatpush1.msra.mxu0 %v530
  %1811 = vmatprep.mubr.f32.mxu0 %v664
  %1812 = vmatmul.mubr.f32.gmra.mrb[0].mxu0 %v660
  %v1813 = vpop.f32.mrb[0].mxu0
  %v1814 = vadd.f32 %v1744, %v1813
  %v1815 = vpop.f32.mrb[0].mxu0
  %1816 = vdwg.mxu0
  %1817 = vst [vmem:[%s3] sm:$0x1] %v1814
  // Predicated region
  $region14: #{permscore_forward.1} parent=0 // pred_check
    _
  $region15: #{permscore_forward.1} parent=0 // pred_check_branch
    %1819 = sbr.rel (0) target = $region17
  $region16: #{permscore_forward.1} parent=0 // pred_region
    _
  $region17: #{permscore_forward.1} parent=0 // pred_fallthru
    _
  // Predicated region
  $region18: #{permscore_forward.1} parent=0 // pred_check
    _
  $region19: #{permscore_forward.1} parent=0 // pred_check_branch
    %1821 = sbr.rel (0) target = $region21
  $region20: #{permscore_forward.1} parent=0 // pred_region
    _
  $region21: #{permscore_forward.1} parent=0 // pred_fallthru
    _

</llo_original>
